<compile_context>
chip_gen: v7x
topology: tpu7x:2x2x1
jax: 0.10.0
libtpu: 0.0.40
codegen_flags: <defaults>
</compile_context>

<pallas_src>
import jax
import jax.numpy as jnp
from jax.experimental import pallas as pl
from jax.experimental.pallas import tpu as pltpu

# ---------------- synthetic mini-BERT / model config ----------------
BATCH = 2             # config.batch_size
DOC_PAD = 4           # config.doc_pad_size (sentences per document)
SEQ = 8               # tokens per sentence
HIDDEN = 32           # config.bert_hidden_size
INTER = 64            # BERT feed-forward intermediate size
VOCAB = 50
VOCAB_PAD = 64        # vocab rows padded so the one-hot matmul K-dim is 16-aligned
NUM_CLASSES = 3       # config.num_classes
LN_EPS = 1e-12

N_SENT = BATCH * DOC_PAD      # 8  sentences total
N_TOK = N_SENT * SEQ          # 64 tokens total (flat row t -> sentence t//SEQ, pos t%SEQ)

# ---- packed-slab row offsets (shared by init_params and the kernel) ----
# wnarrow: bf16, 32 lanes.  All section offsets are multiples of 16 (bf16 sublane pack).
RN_TOK = 0
RN_POS = RN_TOK + VOCAB_PAD          # 64
RN_WO = RN_POS + N_TOK               # 128
RN_W2 = RN_WO + HIDDEN               # 160
RN_WP = RN_W2 + INTER                # 224
RN_END = RN_WP + HIDDEN              # 256

# wwide: bf16, 96 lanes
RW_QKV = 0
RW_W1 = HIDDEN                       # 32
RW_END = 2 * HIDDEN                  # 64

# vecs: f32, 32 lanes
RV_LNE_G, RV_LNE_B = 0, 1
RV_BQ, RV_BK, RV_BV, RV_BO = 2, 3, 4, 5
RV_LN1_G, RV_LN1_B = 6, 7
RV_B2 = 8
RV_LN2_G, RV_LN2_B = 9, 10
RV_BP = 11
RV_SENTB = 12
RV_DOCB = 13
RV_SELW = 14                         # 14:16   (BATCH rows)
RV_DOCW = 16                         # 16:48   (HIDDEN rows)
RV_END = RV_DOCW + HIDDEN            # 48

# consts64: f32, 64 lanes (compile-time-constant matrices hoisted out of the kernel)
RC_BIAS = 0                          # 0:64   block-diagonal sentence attention bias
RC_SELCLS = RC_BIAS + N_TOK          # 64:72  CLS-token selection matrix
RC_B1 = RC_SELCLS + N_SENT           # 72     FFN-in bias row
RC_END = RC_B1 + 1                   # 73


def _layer_norm(x, g, b):
    mu = jnp.mean(x, axis=-1, keepdims=True)
    var = jnp.mean((x - mu) ** 2, axis=-1, keepdims=True)
    return (x - mu) * jax.lax.rsqrt(var + LN_EPS) * g + b


def _gelu(x):
    c = 0.7978845608028654  # sqrt(2/pi), tanh approximation of GELU
    return 0.5 * x * (1.0 + jnp.tanh(c * (x + 0.044715 * x * x * x)))


# ---------------- single fused kernel: embeddings -> BERT -> pooler -> doc head ----------------
def fused_doc_bert_kernel(ids_ref, maskb_ref, wn_ref, ww_ref, vec_ref, c64_ref, out_ref):
    H = HIDDEN
    f32 = jnp.float32
    bf16 = jnp.bfloat16

    # ---- unpack packed parameters (static, aligned sublane slices of VMEM refs) ----
    tok_emb = wn_ref[RN_TOK:RN_TOK + VOCAB_PAD, :]        # (64, 32) bf16 (rows>=VOCAB are 0)
    pos = wn_ref[RN_POS:RN_POS + N_TOK, :]                # (64, 32) bf16 pre-tiled pos emb
    wo = wn_ref[RN_WO:RN_WO + H, :]                       # (32, 32) bf16
    w2 = wn_ref[RN_W2:RN_W2 + INTER, :]                   # (64, 32) bf16
    wp = wn_ref[RN_WP:RN_WP + H, :]                       # (32, 32) bf16

    wqkv = ww_ref[RW_QKV:RW_QKV + H, :]                   # (32, 96) bf16 = [wq|wk|wv]
    w1p = ww_ref[RW_W1:RW_W1 + H, :]                      # (32, 96) bf16 = [w1 | 0]

    ln_e_g = vec_ref[RV_LNE_G:RV_LNE_G + 1, :]
    ln_e_b = vec_ref[RV_LNE_B:RV_LNE_B + 1, :]
    bq = vec_ref[RV_BQ:RV_BQ + 1, :]
    bk = vec_ref[RV_BK:RV_BK + 1, :]
    bv = vec_ref[RV_BV:RV_BV + 1, :]
    bo = vec_ref[RV_BO:RV_BO + 1, :]
    ln1_g = vec_ref[RV_LN1_G:RV_LN1_G + 1, :]
    ln1_b = vec_ref[RV_LN1_B:RV_LN1_B + 1, :]
    b2 = vec_ref[RV_B2:RV_B2 + 1, :]
    ln2_g = vec_ref[RV_LN2_G:RV_LN2_G + 1, :]
    ln2_b = vec_ref[RV_LN2_B:RV_LN2_B + 1, :]
    bp = vec_ref[RV_BP:RV_BP + 1, :]
    sent_b = vec_ref[RV_SENTB:RV_SENTB + 1, :]            # (1, 32) sent_fc bias broadcast row
    doc_b = vec_ref[RV_DOCB:RV_DOCB + 1, :]               # (1, 32) document_fc bias (lanes 0:C)
    sel_w_rows = vec_ref[RV_SELW:RV_SELW + BATCH, :]      # (2, 32) sent_fc weights (lanes 0:N_SENT)
    doc_wT = vec_ref[RV_DOCW:RV_DOCW + H, :]              # (32, 32) document_fc weight^T (lanes 0:C)

    attn_bias = c64_ref[RC_BIAS:RC_BIAS + N_TOK, :]       # (64, 64) block-diag sentence bias
    sel_cls = c64_ref[RC_SELCLS:RC_SELCLS + N_SENT, :]    # (8, 64) CLS selection matrix
    b1 = c64_ref[RC_B1:RC_B1 + 1, :]                      # (1, 64) FFN-in bias

    # ---- embedding lookup: gather-free one-hot matmul on the MXU ----
    ids = ids_ref[...]                                                # (T, 1) int32
    vocab_iota = jax.lax.broadcasted_iota(jnp.int32, (N_TOK, VOCAB_PAD), 1)
    onehot = (ids == vocab_iota).astype(bf16)                         # (T, Vpad) bf16
    emb = jnp.dot(onehot, tok_emb, preferred_element_type=f32)        # (T, H) f32
    x = _layer_norm(emb + pos.astype(f32), ln_e_g, ln_e_b)

    # ---- single-head self-attention over the flat (T, H) slab, fused QKV matmul ----
    scale = H ** -0.5
    qkv = jnp.dot(x.astype(bf16), wqkv, preferred_element_type=f32)   # (T, 3H) f32
    q = (qkv[:, 0:H] + bq) * scale                                    # fold 1/sqrt(H) into q
    k = qkv[:, H:2 * H] + bk
    v = qkv[:, 2 * H:3 * H] + bv

    # scores over all 64 tokens: explicit dot_general contracting the hidden dim
    s = jax.lax.dot_general(q.astype(bf16), k.astype(bf16),
                            (((1,), (1,)), ((), ())),
                            preferred_element_type=f32)               # (T, T) f32
    # precomputed block-diagonal sentence bias + data-dependent key-padding bias row
    s = s + attn_bias + maskb_ref[...]
    # NOTE: every query row has >= 1 unmasked same-sentence key (lengths >= 1), so the
    # softmax denominator is never the all-masked degenerate case.
    s = s - jnp.max(s, axis=-1, keepdims=True)
    p = jnp.exp(s)
    p = p * pl.reciprocal(jnp.sum(p, axis=-1, keepdims=True), approx=True)
    ctx = jnp.dot(p.astype(bf16), v.astype(bf16), preferred_element_type=f32)   # (T, H)

    attn = jnp.dot(ctx.astype(bf16), wo, preferred_element_type=f32) + bo
    x = _layer_norm(x + attn, ln1_g, ln1_b)

    # ---- feed-forward (w1 padded to 96 lanes; real columns are 0:INTER) ----
    h96 = jnp.dot(x.astype(bf16), w1p, preferred_element_type=f32)    # (T, 96)
    h = _gelu(h96[:, 0:INTER] + b1)                                   # (T, INTER)
    f = jnp.dot(h.astype(bf16), w2, preferred_element_type=f32) + b2  # (T, H)
    y = _layer_norm(x + f, ln2_g, ln2_b)

    # ---- BERT pooler on the CLS token of each sentence (precomputed selection matmul) ----
    cls = jnp.dot(sel_cls.astype(bf16), y.astype(bf16),
                  preferred_element_type=f32)                         # (N, H)
    pooled = jnp.tanh(jnp.dot(cls.astype(bf16), wp,
                              preferred_element_type=f32) + bp)       # (N, H)

    # ---- fused document head: sent_fc as a (B, N) selection matmul, then document_fc ----
    # (these matmuls are ~2x8x32 / 2x32x32 -> left in f32, negligible)
    sel_w = sel_w_rows[:, 0:N_SENT]                                   # (B, N)
    doc_pool = jnp.dot(sel_w, pooled, preferred_element_type=f32) + sent_b       # (B, H)
    logits = jnp.dot(doc_pool, doc_wT, preferred_element_type=f32) + doc_b       # (B, 32)
    out_ref[...] = logits[:, 0:NUM_CLASSES]                           # (B, C)


# ---------------- parameters (deterministic, synthetic, pre-packed) ----------------
def init_params(key):
    ks = jax.random.split(key, 12)

    def dense(k, shape):
        return 0.02 * jax.random.normal(k, shape, jnp.float32)

    tok_emb = dense(ks[0], (VOCAB, HIDDEN))
    pos_emb = dense(ks[1], (SEQ, HIDDEN))
    wq = dense(ks[2], (HIDDEN, HIDDEN))
    wk = dense(ks[3], (HIDDEN, HIDDEN))
    wv = dense(ks[4], (HIDDEN, HIDDEN))
    wo = dense(ks[5], (HIDDEN, HIDDEN))
    w1 = dense(ks[6], (HIDDEN, INTER))
    w2 = dense(ks[7], (INTER, HIDDEN))
    wp = dense(ks[8], (HIDDEN, HIDDEN))
    sent_w = dense(ks[9], (1, DOC_PAD))                 # nn.Linear(doc_pad_size, 1).weight
    sent_b = 0.0                                        # nn.Linear(doc_pad_size, 1).bias
    doc_w = dense(ks[10], (NUM_CLASSES, HIDDEN))        # nn.Linear(H, C).weight
    doc_b = jnp.zeros((NUM_CLASSES,), jnp.float32)

    ones_h = jnp.ones((1, HIDDEN), jnp.float32)
    zeros_h = jnp.zeros((1, HIDDEN), jnp.float32)

    # --- bf16 narrow-lane weight slab (32 lanes) ---
    tok_emb_pad = jnp.concatenate(
        [tok_emb, jnp.zeros((VOCAB_PAD - VOCAB, HIDDEN), jnp.float32)], axis=0)   # (64, H)
    pos_tiled = jnp.tile(pos_emb, (N_SENT, 1))                                    # (T, H)
    wnarrow = jnp.concatenate([tok_emb_pad, pos_tiled, wo, w2, wp],
                              axis=0).astype(jnp.bfloat16)                        # (256, H)
    assert wnarrow.shape[0] == RN_END

    # --- bf16 wide-lane weight slab (96 lanes): fused [wq|wk|wv] and padded w1 ---
    wqkv = jnp.concatenate([wq, wk, wv], axis=1)                                  # (H, 3H)
    w1_pad = jnp.concatenate(
        [w1, jnp.zeros((HIDDEN, 3 * HIDDEN - INTER), jnp.float32)], axis=1)       # (H, 3H)
    wwide = jnp.concatenate([wqkv, w1_pad], axis=0).astype(jnp.bfloat16)          # (64, 96)
    assert wwide.shape[0] == RW_END

    # --- f32 vector + document-head slab (32 lanes) ---
    # sent_fc folded into a (B, B*DOC) block selection matrix: sel_w[b, b*DOC+d] = sent_w[0, d]
    sel_w = (jnp.eye(BATCH, dtype=jnp.float32)[:, :, None]
             * sent_w[0][None, None, :]).reshape(BATCH, N_SENT)                   # (B, N)
    sel_w_pad = jnp.zeros((BATCH, HIDDEN), jnp.float32).at[:, :N_SENT].set(sel_w)
    doc_wT_pad = jnp.zeros((HIDDEN, HIDDEN), jnp.float32).at[:, :NUM_CLASSES].set(doc_w.T)
    doc_b_pad = jnp.zeros((1, HIDDEN), jnp.float32).at[0, :NUM_CLASSES].set(doc_b)
    vecs = jnp.concatenate([
        ones_h, zeros_h,                              # embedding LN gamma/beta
        zeros_h, zeros_h, zeros_h,                    # bq, bk, bv
        zeros_h,                                      # bo
        ones_h, zeros_h,                              # post-attention LN gamma/beta
        zeros_h,                                      # b2
        ones_h, zeros_h,                              # post-FFN LN gamma/beta
        zeros_h,                                      # pooler bias
        jnp.full((1, HIDDEN), sent_b, jnp.float32),   # sent_fc bias broadcast row
        doc_b_pad,                                    # document_fc bias (lanes 0:C)
        sel_w_pad,                                    # (B, 32), lanes 0:N_SENT
        doc_wT_pad,                                   # (H, 32), lanes 0:C
    ], axis=0)                                        # (48, 32)
    assert vecs.shape[0] == RV_END

    # --- f32 lane-64 constant slab (hoisted compile-time-constant matrices) ---
    q_sent = jnp.arange(N_TOK)[:, None] // SEQ
    k_sent = jnp.arange(N_TOK)[None, :] // SEQ
    attn_bias = jnp.where(q_sent == k_sent, 0.0, -1e9).astype(jnp.float32)        # (T, T)
    sel_cls = (jnp.arange(N_TOK)[None, :]
               == (jnp.arange(N_SENT)[:, None] * SEQ)).astype(jnp.float32)        # (N, T)
    b1_row = jnp.zeros((1, INTER), jnp.float32)                                   # FFN-in bias
    consts64 = jnp.concatenate([attn_bias, sel_cls, b1_row], axis=0)              # (73, 64)
    assert consts64.shape[0] == RC_END

    return {'wnarrow': wnarrow, 'wwide': wwide, 'vecs': vecs, 'consts64': consts64}


# ---------------- wrapper ----------------
@jax.jit
def model_forward(params, x_ids, mask):
    # Pure reshapes (no copies): (B, DOC, S) -> flat token rows t = (b*DOC + d)*SEQ + s.
    # This replaces the PyTorch permute(1, 0, 2) + python loop over sentences.
    ids2 = x_ids.reshape(N_TOK, 1).astype(jnp.int32)                        # (T, 1)
    mask_bias = (1.0 - mask.reshape(1, N_TOK).astype(jnp.float32)) * (-1e9)  # (1, T)

    args = [ids2, mask_bias,
            params['wnarrow'], params['wwide'], params['vecs'], params['consts64']]

    def full_spec(shape):
        z = (0,) * len(shape)
        return pl.BlockSpec(shape, lambda i, z=z: z)

    out = pl.pallas_call(
        fused_doc_bert_kernel,
        out_shape=jax.ShapeDtypeStruct((BATCH, NUM_CLASSES), jnp.float32),
        grid=(1,),                                   # whole workload in one grid step
        in_specs=[full_spec(a.shape) for a in args],
        out_specs=full_spec((BATCH, NUM_CLASSES)),
        compiler_params=pltpu.CompilerParams(dimension_semantics=("arbitrary",)),
    )(*args)
    return out


if __name__ == "__main__":
    key = jax.random.PRNGKey(0)
    pkey, xkey, lkey = jax.random.split(key, 3)
    params = init_params(pkey)

    x_ids = jax.random.randint(xkey, (BATCH, DOC_PAD, SEQ), 0, VOCAB, dtype=jnp.int32)
    lengths = jax.random.randint(lkey, (BATCH, DOC_PAD), 4, SEQ + 1)
    mask = (jnp.arange(SEQ)[None, None, :] < lengths[:, :, None]).astype(jnp.int32)

    out = model_forward(params, x_ids, mask)
    jax.block_until_ready(out)
    assert out.shape == (BATCH, NUM_CLASSES)
    print("KERNEL_OK")
</pallas_src>

<mosaic_0001>
module attributes {stable_mosaic.version = 11 : i64} {
  func.func @fused_doc_bert_kernel(%arg0: i32, %arg1: memref<64x1xi32, #tpu.memory_space<vmem>>, %arg2: memref<1x64xf32, #tpu.memory_space<vmem>>, %arg3: memref<256x32xbf16, #tpu.memory_space<vmem>>, %arg4: memref<64x96xbf16, #tpu.memory_space<vmem>>, %arg5: memref<48x32xf32, #tpu.memory_space<vmem>>, %arg6: memref<73x64xf32, #tpu.memory_space<vmem>>, %arg7: memref<2x3xf32, #tpu.memory_space<vmem>>) attributes {dimension_semantics = [#tpu.dimension_semantics<arbitrary>], iteration_bounds = array<i64: 1>, scalar_prefetch = 0 : i64, scratch_operands = 0 : i64, tpu.core_type = #tpu.core_type<tc>, window_params = [{pipeline_mode = #tpu.pipeline_mode<synchronous>, transform_indices = @transform_0, window_bounds = array<i64: 64, 1>}, {pipeline_mode = #tpu.pipeline_mode<synchronous>, transform_indices = @transform_1, window_bounds = array<i64: 1, 64>}, {pipeline_mode = #tpu.pipeline_mode<synchronous>, transform_indices = @transform_2, window_bounds = array<i64: 256, 32>}, {pipeline_mode = #tpu.pipeline_mode<synchronous>, transform_indices = @transform_3, window_bounds = array<i64: 64, 96>}, {pipeline_mode = #tpu.pipeline_mode<synchronous>, transform_indices = @transform_4, window_bounds = array<i64: 48, 32>}, {pipeline_mode = #tpu.pipeline_mode<synchronous>, transform_indices = @transform_5, window_bounds = array<i64: 73, 64>}, {pipeline_mode = #tpu.pipeline_mode<synchronous>, transform_indices = @transform_6, window_bounds = array<i64: 2, 3>}]} {
    %c0 = arith.constant 0 : index
    %c0_0 = arith.constant 0 : index
    %0 = vector.load %arg3[%c0, %c0_0] : memref<256x32xbf16, #tpu.memory_space<vmem>>, vector<64x32xbf16>
    %c64 = arith.constant 64 : index
    %c0_1 = arith.constant 0 : index
    %1 = vector.load %arg3[%c64, %c0_1] : memref<256x32xbf16, #tpu.memory_space<vmem>>, vector<64x32xbf16>
    %c128 = arith.constant 128 : index
    %c0_2 = arith.constant 0 : index
    %2 = vector.load %arg3[%c128, %c0_2] : memref<256x32xbf16, #tpu.memory_space<vmem>>, vector<32x32xbf16>
    %c160 = arith.constant 160 : index
    %c0_3 = arith.constant 0 : index
    %3 = vector.load %arg3[%c160, %c0_3] : memref<256x32xbf16, #tpu.memory_space<vmem>>, vector<64x32xbf16>
    %c224 = arith.constant 224 : index
    %c0_4 = arith.constant 0 : index
    %4 = vector.load %arg3[%c224, %c0_4] : memref<256x32xbf16, #tpu.memory_space<vmem>>, vector<32x32xbf16>
    %c0_5 = arith.constant 0 : index
    %c0_6 = arith.constant 0 : index
    %5 = vector.load %arg4[%c0_5, %c0_6] : memref<64x96xbf16, #tpu.memory_space<vmem>>, vector<32x96xbf16>
    %c32 = arith.constant 32 : index
    %c0_7 = arith.constant 0 : index
    %6 = vector.load %arg4[%c32, %c0_7] : memref<64x96xbf16, #tpu.memory_space<vmem>>, vector<32x96xbf16>
    %c0_8 = arith.constant 0 : index
    %c0_9 = arith.constant 0 : index
    %7 = vector.load %arg5[%c0_8, %c0_9] : memref<48x32xf32, #tpu.memory_space<vmem>>, vector<1x32xf32>
    %c1 = arith.constant 1 : index
    %c0_10 = arith.constant 0 : index
    %8 = vector.load %arg5[%c1, %c0_10] : memref<48x32xf32, #tpu.memory_space<vmem>>, vector<1x32xf32>
    %c2 = arith.constant 2 : index
    %c0_11 = arith.constant 0 : index
    %9 = vector.load %arg5[%c2, %c0_11] : memref<48x32xf32, #tpu.memory_space<vmem>>, vector<1x32xf32>
    %c3 = arith.constant 3 : index
    %c0_12 = arith.constant 0 : index
    %10 = vector.load %arg5[%c3, %c0_12] : memref<48x32xf32, #tpu.memory_space<vmem>>, vector<1x32xf32>
    %c4 = arith.constant 4 : index
    %c0_13 = arith.constant 0 : index
    %11 = vector.load %arg5[%c4, %c0_13] : memref<48x32xf32, #tpu.memory_space<vmem>>, vector<1x32xf32>
    %c5 = arith.constant 5 : index
    %c0_14 = arith.constant 0 : index
    %12 = vector.load %arg5[%c5, %c0_14] : memref<48x32xf32, #tpu.memory_space<vmem>>, vector<1x32xf32>
    %c6 = arith.constant 6 : index
    %c0_15 = arith.constant 0 : index
    %13 = vector.load %arg5[%c6, %c0_15] : memref<48x32xf32, #tpu.memory_space<vmem>>, vector<1x32xf32>
    %c7 = arith.constant 7 : index
    %c0_16 = arith.constant 0 : index
    %14 = vector.load %arg5[%c7, %c0_16] : memref<48x32xf32, #tpu.memory_space<vmem>>, vector<1x32xf32>
    %c8 = arith.constant 8 : index
    %c0_17 = arith.constant 0 : index
    %15 = vector.load %arg5[%c8, %c0_17] : memref<48x32xf32, #tpu.memory_space<vmem>>, vector<1x32xf32>
    %c9 = arith.constant 9 : index
    %c0_18 = arith.constant 0 : index
    %16 = vector.load %arg5[%c9, %c0_18] : memref<48x32xf32, #tpu.memory_space<vmem>>, vector<1x32xf32>
    %c10 = arith.constant 10 : index
    %c0_19 = arith.constant 0 : index
    %17 = vector.load %arg5[%c10, %c0_19] : memref<48x32xf32, #tpu.memory_space<vmem>>, vector<1x32xf32>
    %c11 = arith.constant 11 : index
    %c0_20 = arith.constant 0 : index
    %18 = vector.load %arg5[%c11, %c0_20] : memref<48x32xf32, #tpu.memory_space<vmem>>, vector<1x32xf32>
    %c12 = arith.constant 12 : index
    %c0_21 = arith.constant 0 : index
    %19 = vector.load %arg5[%c12, %c0_21] : memref<48x32xf32, #tpu.memory_space<vmem>>, vector<1x32xf32>
    %c13 = arith.constant 13 : index
    %c0_22 = arith.constant 0 : index
    %20 = vector.load %arg5[%c13, %c0_22] : memref<48x32xf32, #tpu.memory_space<vmem>>, vector<1x32xf32>
    %c14 = arith.constant 14 : index
    %c0_23 = arith.constant 0 : index
    %21 = vector.load %arg5[%c14, %c0_23] : memref<48x32xf32, #tpu.memory_space<vmem>>, vector<2x32xf32>
    %c16 = arith.constant 16 : index
    %c0_24 = arith.constant 0 : index
    %22 = vector.load %arg5[%c16, %c0_24] : memref<48x32xf32, #tpu.memory_space<vmem>>, vector<32x32xf32>
    %c0_25 = arith.constant 0 : index
    %c0_26 = arith.constant 0 : index
    %23 = vector.load %arg6[%c0_25, %c0_26] : memref<73x64xf32, #tpu.memory_space<vmem>>, vector<64x64xf32>
    %c64_27 = arith.constant 64 : index
    %c0_28 = arith.constant 0 : index
    %24 = vector.load %arg6[%c64_27, %c0_28] : memref<73x64xf32, #tpu.memory_space<vmem>>, vector<8x64xf32>
    %c72 = arith.constant 72 : index
    %c0_29 = arith.constant 0 : index
    %25 = vector.load %arg6[%c72, %c0_29] : memref<73x64xf32, #tpu.memory_space<vmem>>, vector<1x64xf32>
    %c0_30 = arith.constant 0 : index
    %c0_31 = arith.constant 0 : index
    %26 = vector.load %arg1[%c0_30, %c0_31] : memref<64x1xi32, #tpu.memory_space<vmem>>, vector<64x1xi32>
    %27 = tpu.iota {dimensions = array<i32: 1>} : vector<64x64xi32>
    %28 = vector.broadcast %26 : vector<64x1xi32> to vector<64x64xi32>
    %29 = arith.cmpi eq, %28, %27 : vector<64x64xi32>
    %30 = arith.extui %29 : vector<64x64xi1> to vector<64x64xi32>
    %31 = arith.sitofp %30 : vector<64x64xi32> to vector<64x64xf32>
    %32 = arith.truncf %31 : vector<64x64xf32> to vector<64x64xbf16>
    %cst = arith.constant dense<0.000000e+00> : vector<64x32xf32>
    %33 = tpu.matmul %32, %0, %cst {dimension_numbers = #tpu.dot_dimension_numbers<[1], [0], [0], [1], [0, 0, 1, 1], [], []>} : vector<64x64xbf16>, vector<64x32xbf16>, vector<64x32xf32> -> vector<64x32xf32>
    %34 = arith.extf %1 : vector<64x32xbf16> to vector<64x32xf32>
    %35 = arith.addf %33, %34 : vector<64x32xf32>
    %cst_32 = arith.constant dense<0.000000e+00> : vector<64xf32>
    %36 = vector.multi_reduction <add>, %35, %cst_32 [1] : vector<64x32xf32> to vector<64xf32>
    %37 = vector.shape_cast %36 : vector<64xf32> to vector<64x1xf32>
    %cst_33 = arith.constant 3.200000e+01 : f32
    %38 = vector.broadcast %cst_33 : f32 to vector<64x1xf32>
    %39 = arith.divf %37, %38 : vector<64x1xf32>
    %40 = vector.broadcast %39 : vector<64x1xf32> to vector<64x32xf32>
    %41 = arith.subf %35, %40 : vector<64x32xf32>
    %42 = arith.mulf %41, %41 : vector<64x32xf32>
    %cst_34 = arith.constant dense<0.000000e+00> : vector<64xf32>
    %43 = vector.multi_reduction <add>, %42, %cst_34 [1] : vector<64x32xf32> to vector<64xf32>
    %44 = vector.shape_cast %43 : vector<64xf32> to vector<64x1xf32>
    %cst_35 = arith.constant 3.200000e+01 : f32
    %45 = vector.broadcast %cst_35 : f32 to vector<64x1xf32>
    %46 = arith.divf %44, %45 : vector<64x1xf32>
    %47 = vector.broadcast %39 : vector<64x1xf32> to vector<64x32xf32>
    %48 = arith.subf %35, %47 : vector<64x32xf32>
    %cst_36 = arith.constant 9.99999996E-13 : f32
    %49 = vector.broadcast %cst_36 : f32 to vector<64x1xf32>
    %50 = arith.addf %46, %49 : vector<64x1xf32>
    %51 = math.rsqrt %50 : vector<64x1xf32>
    %52 = vector.broadcast %51 : vector<64x1xf32> to vector<64x32xf32>
    %53 = arith.mulf %48, %52 : vector<64x32xf32>
    %54 = vector.broadcast %7 : vector<1x32xf32> to vector<64x32xf32>
    %55 = arith.mulf %53, %54 : vector<64x32xf32>
    %56 = vector.broadcast %8 : vector<1x32xf32> to vector<64x32xf32>
    %57 = arith.addf %55, %56 : vector<64x32xf32>
    %58 = arith.truncf %57 : vector<64x32xf32> to vector<64x32xbf16>
    %cst_37 = arith.constant dense<0.000000e+00> : vector<64x96xf32>
    %59 = tpu.matmul %58, %5, %cst_37 {dimension_numbers = #tpu.dot_dimension_numbers<[1], [0], [0], [1], [0, 0, 1, 1], [], []>} : vector<64x32xbf16>, vector<32x96xbf16>, vector<64x96xf32> -> vector<64x96xf32>
    %60 = vector.extract_strided_slice %59 {offsets = [0, 0], sizes = [64, 32], strides = [1, 1]} : vector<64x96xf32> to vector<64x32xf32>
    %61 = vector.broadcast %9 : vector<1x32xf32> to vector<64x32xf32>
    %62 = arith.addf %60, %61 : vector<64x32xf32>
    %cst_38 = arith.constant 0.176776692 : f32
    %63 = vector.broadcast %cst_38 : f32 to vector<64x32xf32>
    %64 = arith.mulf %62, %63 : vector<64x32xf32>
    %65 = vector.extract_strided_slice %59 {offsets = [0, 32], sizes = [64, 32], strides = [1, 1]} : vector<64x96xf32> to vector<64x32xf32>
    %66 = vector.broadcast %10 : vector<1x32xf32> to vector<64x32xf32>
    %67 = arith.addf %65, %66 : vector<64x32xf32>
    %68 = vector.extract_strided_slice %59 {offsets = [0, 64], sizes = [64, 32], strides = [1, 1]} : vector<64x96xf32> to vector<64x32xf32>
    %69 = vector.broadcast %11 : vector<1x32xf32> to vector<64x32xf32>
    %70 = arith.addf %68, %69 : vector<64x32xf32>
    %71 = arith.truncf %64 : vector<64x32xf32> to vector<64x32xbf16>
    %72 = arith.truncf %67 : vector<64x32xf32> to vector<64x32xbf16>
    %cst_39 = arith.constant dense<0.000000e+00> : vector<64x64xf32>
    %73 = tpu.matmul %71, %72, %cst_39 {dimension_numbers = #tpu.dot_dimension_numbers<[1], [1], [0], [0], [0, 0, 1, 0], [], []>} : vector<64x32xbf16>, vector<64x32xbf16>, vector<64x64xf32> -> vector<64x64xf32>
    %74 = arith.addf %73, %23 : vector<64x64xf32>
    %c0_40 = arith.constant 0 : index
    %c0_41 = arith.constant 0 : index
    %75 = vector.load %arg2[%c0_40, %c0_41] : memref<1x64xf32, #tpu.memory_space<vmem>>, vector<1x64xf32>
    %76 = vector.broadcast %75 : vector<1x64xf32> to vector<64x64xf32>
    %77 = arith.addf %74, %76 : vector<64x64xf32>
    %cst_42 = arith.constant dense<0xFF800000> : vector<64xf32>
    %78 = vector.multi_reduction <maximumf>, %77, %cst_42 [1] : vector<64x64xf32> to vector<64xf32>
    %79 = vector.shape_cast %78 : vector<64xf32> to vector<64x1xf32>
    %80 = vector.broadcast %79 : vector<64x1xf32> to vector<64x64xf32>
    %81 = arith.subf %77, %80 : vector<64x64xf32>
    %82 = math.exp %81 : vector<64x64xf32>
    %cst_43 = arith.constant dense<0.000000e+00> : vector<64xf32>
    %83 = vector.multi_reduction <add>, %82, %cst_43 [1] : vector<64x64xf32> to vector<64xf32>
    %84 = vector.shape_cast %83 : vector<64xf32> to vector<64x1xf32>
    %85 = tpu.reciprocal %84 {approx = true} : vector<64x1xf32> -> vector<64x1xf32>
    %86 = vector.broadcast %85 : vector<64x1xf32> to vector<64x64xf32>
    %87 = arith.mulf %82, %86 : vector<64x64xf32>
    %88 = arith.truncf %87 : vector<64x64xf32> to vector<64x64xbf16>
    %89 = arith.truncf %70 : vector<64x32xf32> to vector<64x32xbf16>
    %cst_44 = arith.constant dense<0.000000e+00> : vector<64x32xf32>
    %90 = tpu.matmul %88, %89, %cst_44 {dimension_numbers = #tpu.dot_dimension_numbers<[1], [0], [0], [1], [0, 0, 1, 1], [], []>} : vector<64x64xbf16>, vector<64x32xbf16>, vector<64x32xf32> -> vector<64x32xf32>
    %91 = arith.truncf %90 : vector<64x32xf32> to vector<64x32xbf16>
    %cst_45 = arith.constant dense<0.000000e+00> : vector<64x32xf32>
    %92 = tpu.matmul %91, %2, %cst_45 {dimension_numbers = #tpu.dot_dimension_numbers<[1], [0], [0], [1], [0, 0, 1, 1], [], []>} : vector<64x32xbf16>, vector<32x32xbf16>, vector<64x32xf32> -> vector<64x32xf32>
    %93 = vector.broadcast %12 : vector<1x32xf32> to vector<64x32xf32>
    %94 = arith.addf %92, %93 : vector<64x32xf32>
    %95 = arith.addf %57, %94 : vector<64x32xf32>
    %cst_46 = arith.constant dense<0.000000e+00> : vector<64xf32>
    %96 = vector.multi_reduction <add>, %95, %cst_46 [1] : vector<64x32xf32> to vector<64xf32>
    %97 = vector.shape_cast %96 : vector<64xf32> to vector<64x1xf32>
    %cst_47 = arith.constant 3.200000e+01 : f32
    %98 = vector.broadcast %cst_47 : f32 to vector<64x1xf32>
    %99 = arith.divf %97, %98 : vector<64x1xf32>
    %100 = vector.broadcast %99 : vector<64x1xf32> to vector<64x32xf32>
    %101 = arith.subf %95, %100 : vector<64x32xf32>
    %102 = arith.mulf %101, %101 : vector<64x32xf32>
    %cst_48 = arith.constant dense<0.000000e+00> : vector<64xf32>
    %103 = vector.multi_reduction <add>, %102, %cst_48 [1] : vector<64x32xf32> to vector<64xf32>
    %104 = vector.shape_cast %103 : vector<64xf32> to vector<64x1xf32>
    %cst_49 = arith.constant 3.200000e+01 : f32
    %105 = vector.broadcast %cst_49 : f32 to vector<64x1xf32>
    %106 = arith.divf %104, %105 : vector<64x1xf32>
    %107 = vector.broadcast %99 : vector<64x1xf32> to vector<64x32xf32>
    %108 = arith.subf %95, %107 : vector<64x32xf32>
    %cst_50 = arith.constant 9.99999996E-13 : f32
    %109 = vector.broadcast %cst_50 : f32 to vector<64x1xf32>
    %110 = arith.addf %106, %109 : vector<64x1xf32>
    %111 = math.rsqrt %110 : vector<64x1xf32>
    %112 = vector.broadcast %111 : vector<64x1xf32> to vector<64x32xf32>
    %113 = arith.mulf %108, %112 : vector<64x32xf32>
    %114 = vector.broadcast %13 : vector<1x32xf32> to vector<64x32xf32>
    %115 = arith.mulf %113, %114 : vector<64x32xf32>
    %116 = vector.broadcast %14 : vector<1x32xf32> to vector<64x32xf32>
    %117 = arith.addf %115, %116 : vector<64x32xf32>
    %118 = arith.truncf %117 : vector<64x32xf32> to vector<64x32xbf16>
    %cst_51 = arith.constant dense<0.000000e+00> : vector<64x96xf32>
    %119 = tpu.matmul %118, %6, %cst_51 {dimension_numbers = #tpu.dot_dimension_numbers<[1], [0], [0], [1], [0, 0, 1, 1], [], []>} : vector<64x32xbf16>, vector<32x96xbf16>, vector<64x96xf32> -> vector<64x96xf32>
    %120 = vector.extract_strided_slice %119 {offsets = [0, 0], sizes = [64, 64], strides = [1, 1]} : vector<64x96xf32> to vector<64x64xf32>
    %121 = vector.broadcast %25 : vector<1x64xf32> to vector<64x64xf32>
    %122 = arith.addf %120, %121 : vector<64x64xf32>
    %cst_52 = arith.constant 5.000000e-01 : f32
    %123 = vector.broadcast %cst_52 : f32 to vector<64x64xf32>
    %124 = arith.mulf %123, %122 : vector<64x64xf32>
    %cst_53 = arith.constant 4.471500e-02 : f32
    %125 = vector.broadcast %cst_53 : f32 to vector<64x64xf32>
    %126 = arith.mulf %125, %122 : vector<64x64xf32>
    %127 = arith.mulf %126, %122 : vector<64x64xf32>
    %128 = arith.mulf %127, %122 : vector<64x64xf32>
    %129 = arith.addf %122, %128 : vector<64x64xf32>
    %cst_54 = arith.constant 0.797884583 : f32
    %130 = vector.broadcast %cst_54 : f32 to vector<64x64xf32>
    %131 = arith.mulf %130, %129 : vector<64x64xf32>
    %132 = math.tanh %131 : vector<64x64xf32>
    %cst_55 = arith.constant 1.000000e+00 : f32
    %133 = vector.broadcast %cst_55 : f32 to vector<64x64xf32>
    %134 = arith.addf %133, %132 : vector<64x64xf32>
    %135 = arith.mulf %124, %134 : vector<64x64xf32>
    %136 = arith.truncf %135 : vector<64x64xf32> to vector<64x64xbf16>
    %cst_56 = arith.constant dense<0.000000e+00> : vector<64x32xf32>
    %137 = tpu.matmul %136, %3, %cst_56 {dimension_numbers = #tpu.dot_dimension_numbers<[1], [0], [0], [1], [0, 0, 1, 1], [], []>} : vector<64x64xbf16>, vector<64x32xbf16>, vector<64x32xf32> -> vector<64x32xf32>
    %138 = vector.broadcast %15 : vector<1x32xf32> to vector<64x32xf32>
    %139 = arith.addf %137, %138 : vector<64x32xf32>
    %140 = arith.addf %117, %139 : vector<64x32xf32>
    %cst_57 = arith.constant dense<0.000000e+00> : vector<64xf32>
    %141 = vector.multi_reduction <add>, %140, %cst_57 [1] : vector<64x32xf32> to vector<64xf32>
    %142 = vector.shape_cast %141 : vector<64xf32> to vector<64x1xf32>
    %cst_58 = arith.constant 3.200000e+01 : f32
    %143 = vector.broadcast %cst_58 : f32 to vector<64x1xf32>
    %144 = arith.divf %142, %143 : vector<64x1xf32>
    %145 = vector.broadcast %144 : vector<64x1xf32> to vector<64x32xf32>
    %146 = arith.subf %140, %145 : vector<64x32xf32>
    %147 = arith.mulf %146, %146 : vector<64x32xf32>
    %cst_59 = arith.constant dense<0.000000e+00> : vector<64xf32>
    %148 = vector.multi_reduction <add>, %147, %cst_59 [1] : vector<64x32xf32> to vector<64xf32>
    %149 = vector.shape_cast %148 : vector<64xf32> to vector<64x1xf32>
    %cst_60 = arith.constant 3.200000e+01 : f32
    %150 = vector.broadcast %cst_60 : f32 to vector<64x1xf32>
    %151 = arith.divf %149, %150 : vector<64x1xf32>
    %152 = vector.broadcast %144 : vector<64x1xf32> to vector<64x32xf32>
    %153 = arith.subf %140, %152 : vector<64x32xf32>
    %cst_61 = arith.constant 9.99999996E-13 : f32
    %154 = vector.broadcast %cst_61 : f32 to vector<64x1xf32>
    %155 = arith.addf %151, %154 : vector<64x1xf32>
    %156 = math.rsqrt %155 : vector<64x1xf32>
    %157 = vector.broadcast %156 : vector<64x1xf32> to vector<64x32xf32>
    %158 = arith.mulf %153, %157 : vector<64x32xf32>
    %159 = vector.broadcast %16 : vector<1x32xf32> to vector<64x32xf32>
    %160 = arith.mulf %158, %159 : vector<64x32xf32>
    %161 = vector.broadcast %17 : vector<1x32xf32> to vector<64x32xf32>
    %162 = arith.addf %160, %161 : vector<64x32xf32>
    %163 = arith.truncf %24 : vector<8x64xf32> to vector<8x64xbf16>
    %164 = arith.truncf %162 : vector<64x32xf32> to vector<64x32xbf16>
    %cst_62 = arith.constant dense<0.000000e+00> : vector<8x32xf32>
    %165 = tpu.matmul %163, %164, %cst_62 {dimension_numbers = #tpu.dot_dimension_numbers<[1], [0], [0], [1], [0, 0, 1, 1], [], []>} : vector<8x64xbf16>, vector<64x32xbf16>, vector<8x32xf32> -> vector<8x32xf32>
    %166 = arith.truncf %165 : vector<8x32xf32> to vector<8x32xbf16>
    %cst_63 = arith.constant dense<0.000000e+00> : vector<8x32xf32>
    %167 = tpu.matmul %166, %4, %cst_63 {dimension_numbers = #tpu.dot_dimension_numbers<[1], [0], [0], [1], [0, 0, 1, 1], [], []>} : vector<8x32xbf16>, vector<32x32xbf16>, vector<8x32xf32> -> vector<8x32xf32>
    %168 = vector.broadcast %18 : vector<1x32xf32> to vector<8x32xf32>
    %169 = arith.addf %167, %168 : vector<8x32xf32>
    %170 = math.tanh %169 : vector<8x32xf32>
    %171 = vector.extract_strided_slice %21 {offsets = [0, 0], sizes = [2, 8], strides = [1, 1]} : vector<2x32xf32> to vector<2x8xf32>
    %cst_64 = arith.constant dense<0.000000e+00> : vector<2x32xf32>
    %172 = tpu.matmul %171, %170, %cst_64 {dimension_numbers = #tpu.dot_dimension_numbers<[1], [0], [0], [1], [0, 0, 1, 1], [], []>} : vector<2x8xf32>, vector<8x32xf32>, vector<2x32xf32> -> vector<2x32xf32>
    %173 = vector.broadcast %19 : vector<1x32xf32> to vector<2x32xf32>
    %174 = arith.addf %172, %173 : vector<2x32xf32>
    %cst_65 = arith.constant dense<0.000000e+00> : vector<2x32xf32>
    %175 = tpu.matmul %174, %22, %cst_65 {dimension_numbers = #tpu.dot_dimension_numbers<[1], [0], [0], [1], [0, 0, 1, 1], [], []>} : vector<2x32xf32>, vector<32x32xf32>, vector<2x32xf32> -> vector<2x32xf32>
    %176 = vector.broadcast %20 : vector<1x32xf32> to vector<2x32xf32>
    %177 = arith.addf %175, %176 : vector<2x32xf32>
    %178 = vector.extract_strided_slice %177 {offsets = [0, 0], sizes = [2, 3], strides = [1, 1]} : vector<2x32xf32> to vector<2x3xf32>
    %c0_66 = arith.constant 0 : index
    %c0_67 = arith.constant 0 : index
    %179 = vector.load %arg7[%c0_66, %c0_67] : memref<2x3xf32, #tpu.memory_space<vmem>>, vector<2x3xf32>
    tpu.vector_store %arg7[%c0_66, %c0_67], %178 {strides = array<i32>} : memref<2x3xf32, #tpu.memory_space<vmem>>, vector<2x3xf32>,
    return
  }
  func.func @transform_0(%arg0: i32) -> (i32, i32) {
    %c0_i32 = arith.constant 0 : i32
    %c0_i32_0 = arith.constant 0 : i32
    %c0_i32_1 = arith.constant 0 : i32
    return %c0_i32, %c0_i32_0 : i32, i32
  }
  func.func @transform_1(%arg0: i32) -> (i32, i32) {
    %c0_i32 = arith.constant 0 : i32
    %c0_i32_0 = arith.constant 0 : i32
    %c0_i32_1 = arith.constant 0 : i32
    return %c0_i32, %c0_i32_0 : i32, i32
  }
  func.func @transform_2(%arg0: i32) -> (i32, i32) {
    %c0_i32 = arith.constant 0 : i32
    %c0_i32_0 = arith.constant 0 : i32
    %c0_i32_1 = arith.constant 0 : i32
    return %c0_i32, %c0_i32_0 : i32, i32
  }
  func.func @transform_3(%arg0: i32) -> (i32, i32) {
    %c0_i32 = arith.constant 0 : i32
    %c0_i32_0 = arith.constant 0 : i32
    %c0_i32_1 = arith.constant 0 : i32
    return %c0_i32, %c0_i32_0 : i32, i32
  }
  func.func @transform_4(%arg0: i32) -> (i32, i32) {
    %c0_i32 = arith.constant 0 : i32
    %c0_i32_0 = arith.constant 0 : i32
    %c0_i32_1 = arith.constant 0 : i32
    return %c0_i32, %c0_i32_0 : i32, i32
  }
  func.func @transform_5(%arg0: i32) -> (i32, i32) {
    %c0_i32 = arith.constant 0 : i32
    %c0_i32_0 = arith.constant 0 : i32
    %c0_i32_1 = arith.constant 0 : i32
    return %c0_i32, %c0_i32_0 : i32, i32
  }
  func.func @transform_6(%arg0: i32) -> (i32, i32) {
    %c0_i32 = arith.constant 0 : i32
    %c0_i32_0 = arith.constant 0 : i32
    %c0_i32_1 = arith.constant 0 : i32
    return %c0_i32, %c0_i32_0 : i32, i32
  }
}

</mosaic_0001>

<llo_original>
// kernel: model_forward.1
$region0: #{model_forward.1}
  #allocation0 [shape = 'u32[]', space=smem, size = 0x4, offset = 0x4, fixed_abs, tag = 'smem constant byte address 0x4 - core index']
  #allocation1 [shape = 'u32[144,128]{1,0:T(1,128)}', space=vmem, size = 0x12000, scoped, tag = 'internal scratch']
  %s0 = inlined_call_operand.vmem [shape: s32[64,1], index: 0, kind: input, shape index: {}]
  %s1 = inlined_call_operand.vmem [shape: f32[1,64], index: 1, kind: input, shape index: {}]
  %s2 = inlined_call_operand.vmem [shape: bf16[256,32], index: 2, kind: input, shape index: {}]
  %s3 = inlined_call_operand.vmem [shape: bf16[64,96], index: 3, kind: input, shape index: {}]
  %s4 = inlined_call_operand.vmem [shape: f32[48,32], index: 4, kind: input, shape index: {}]
  %s5 = inlined_call_operand.vmem [shape: f32[73,64], index: 5, kind: input, shape index: {}]
  %s6 = inlined_call_operand.hbm [shape: f32[2,3], index: 6, kind: output, shape index: {}]
  %s7 = sld [smem:[#allocation0]]
  $region34: #{model_forward.1} parent=0
    _
  %s9 = ssub.s32 1, %s7
  %s10 = scalar_select 0, %s9, %s7
  $region1: #{model_forward.1} parent=0
    #allocation2 [shape = 'u8[1024]{0}', space=vmem, size = 0x400, scoped, tag = 'output window, operand 0, single buffered']
    #allocation3 [shape = 's32[1]{0}', space=sflag, size = 0x4, scoped, tag = 'scoped memory for model_forward.1']
    %11 = vsyncpa [#allocation3], 0
    // Predicated region
    $region2: #{model_forward.1} parent=1 // pred_check
      _
    $region3: #{model_forward.1} parent=1 // pred_check_branch
      %13 = sbr.rel (0) target = $region5
    $region4: #{model_forward.1} parent=1 // pred_region
      _
    $region5: #{model_forward.1} parent=1 // pred_fallthru
      _
    // Predicated region
    $region6: #{model_forward.1} parent=1 // pred_check
      _
    $region7: #{model_forward.1} parent=1 // pred_check_branch
      %15 = sbr.rel (0) target = $region9
    $region8: #{model_forward.1} parent=1 // pred_region
      _
    $region9: #{model_forward.1} parent=1 // pred_fallthru
      _
    // Predicated region
    $region10: #{model_forward.1} parent=1 // pred_check
      _
    $region11: #{model_forward.1} parent=1 // pred_check_branch
      %17 = sbr.rel (0) target = $region13
    $region12: #{model_forward.1} parent=1 // pred_region
      _
    $region13: #{model_forward.1} parent=1 // pred_fallthru
      _
    // Predicated region
    $region14: #{model_forward.1} parent=1 // pred_check
      _
    $region15: #{model_forward.1} parent=1 // pred_check_branch
      %19 = sbr.rel (0) target = $region17
    $region16: #{model_forward.1} parent=1 // pred_region
      _
    $region17: #{model_forward.1} parent=1 // pred_fallthru
      _
    // Predicated region
    $region18: #{model_forward.1} parent=1 // pred_check
      _
    $region19: #{model_forward.1} parent=1 // pred_check_branch
      %21 = sbr.rel (0) target = $region21
    $region20: #{model_forward.1} parent=1 // pred_region
      _
    $region21: #{model_forward.1} parent=1 // pred_fallthru
      _
    // Predicated region
    $region22: #{model_forward.1} parent=1 // pred_check
      _
    $region23: #{model_forward.1} parent=1 // pred_check_branch
      %23 = sbr.rel (0) target = $region25
    $region24: #{model_forward.1} parent=1 // pred_region
      _
    $region25: #{model_forward.1} parent=1 // pred_fallthru
      _
    %v25 = vld [vmem:[%s2] sm:$0xf]
    %v26 = vld [vmem:[%s2 + $0x4] sm:$0xf]
    %v27 = vld [vmem:[%s2 + $0x8] sm:$0xf]
    %v28 = vld [vmem:[%s2 + $0xc] sm:$0xf]
    %v29 = vld [vmem:[%s2 + $0x10] sm:$0xf]
    %v30 = vld [vmem:[%s2 + $0x14] sm:$0xf]
    %v31 = vld [vmem:[%s2 + $0x18] sm:$0xf]
    %v32 = vld [vmem:[%s2 + $0x1c] sm:$0xf]
    %v33 = vld [vmem:[%s2 + $0x20] sm:$0xf]
    %v34 = vld [vmem:[%s2 + $0x24] sm:$0xf]
    %v35 = vld [vmem:[%s2 + $0x28] sm:$0xf]
    %v36 = vld [vmem:[%s2 + $0x2c] sm:$0xf]
    %v37 = vld [vmem:[%s2 + $0x30] sm:$0xf]
    %v38 = vld [vmem:[%s2 + $0x34] sm:$0xf]
    %v39 = vld [vmem:[%s2 + $0x38] sm:$0xf]
    %v40 = vld [vmem:[%s2 + $0x3c] sm:$0xf]
    %v41 = vld [vmem:[%s2 + $0x40] sm:$0xf]
    %v42 = vld [vmem:[%s2 + $0x44] sm:$0xf]
    %v43 = vld [vmem:[%s2 + $0x48] sm:$0xf]
    %v44 = vld [vmem:[%s2 + $0x4c] sm:$0xf]
    %v45 = vld [vmem:[%s2 + $0x50] sm:$0xf]
    %v46 = vld [vmem:[%s2 + $0x54] sm:$0xf]
    %v47 = vld [vmem:[%s2 + $0x58] sm:$0xf]
    %v48 = vld [vmem:[%s2 + $0x5c] sm:$0xf]
    %v49 = vld [vmem:[%s2 + $0x60] sm:$0xf]
    %v50 = vld [vmem:[%s2 + $0x64] sm:$0xf]
    %v51 = vld [vmem:[%s2 + $0x68] sm:$0xf]
    %v52 = vld [vmem:[%s2 + $0x6c] sm:$0xf]
    %v53 = vld [vmem:[%s2 + $0x70] sm:$0xf]
    %v54 = vld [vmem:[%s2 + $0x74] sm:$0xf]
    %v55 = vld [vmem:[%s2 + $0x78] sm:$0xf]
    %v56 = vld [vmem:[%s2 + $0x7c] sm:$0xf]
    %v57 = vld [vmem:[%s3] sm:$0xf]
    %v58 = vld [vmem:[%s3 + $0x4] sm:$0xf]
    %v59 = vld [vmem:[%s3 + $0x8] sm:$0xf]
    %v60 = vld [vmem:[%s3 + $0xc] sm:$0xf]
    %v61 = vld [vmem:[%s3 + $0x10] sm:$0xf]
    %v62 = vld [vmem:[%s3 + $0x14] sm:$0xf]
    %v63 = vld [vmem:[%s3 + $0x18] sm:$0xf]
    %v64 = vld [vmem:[%s3 + $0x1c] sm:$0xf]
    %v65 = vld [vmem:[%s4] sm:$0x1]
    %v66 = vld [vmem:[%s4 + $0x1] sm:$0x1]
    %v67 = vld [vmem:[%s4 + $0x2] sm:$0x1]
    %v68 = vld [vmem:[%s4 + $0x3] sm:$0x1]
    %v69 = vld [vmem:[%s4 + $0x4] sm:$0x1]
    %v70 = vld [vmem:[%s4 + $0x5] sm:$0x1]
    %v71 = vld [vmem:[%s4 + $0x6] sm:$0x1]
    %v72 = vld [vmem:[%s4 + $0x7] sm:$0x1]
    %v73 = vld [vmem:[%s4 + $0x8] sm:$0x1]
    %v74 = vld [vmem:[%s4 + $0x9] sm:$0x1]
    %v75 = vld [vmem:[%s4 + $0xa] sm:$0x1]
    %v76 = vld [vmem:[%s4 + $0xb] sm:$0x1]
    %v77 = vld [vmem:[%s4 + $0xc] sm:$0x1]
    %v78 = vld [vmem:[%s4 + $0xd] sm:$0x1]
    %v79 = vld [vmem:[%s4 + $0xe] sm:$0x3]
    %v80 = vld [vmem:[%s4 + $0x10] sm:$0xff]
    %v81 = vld [vmem:[%s4 + $0x18] sm:$0xff]
    %v82 = vld [vmem:[%s4 + $0x20] sm:$0xff]
    %v83 = vld [vmem:[%s4 + $0x28] sm:$0xff]
    %v84 = vld [vmem:[%s5] sm:$0xff]
    %v85 = vld [vmem:[%s5 + $0x8] sm:$0xff]
    %v86 = vld [vmem:[%s5 + $0x10] sm:$0xff]
    %v87 = vld [vmem:[%s5 + $0x18] sm:$0xff]
    %v88 = vld [vmem:[%s5 + $0x20] sm:$0xff]
    %v89 = vld [vmem:[%s5 + $0x28] sm:$0xff]
    %v90 = vld [vmem:[%s5 + $0x30] sm:$0xff]
    %v91 = vld [vmem:[%s5 + $0x38] sm:$0xff]
    %v92 = vld [vmem:[%s5 + $0x40] sm:$0xff]
    %v93 = vld [vmem:[%s5 + $0x48] sm:$0x1]
    %v94 = vld [vmem:[%s0] sm:$0xff]
    %v95 = vld [vmem:[%s0 + $0x8] sm:$0xff]
    %v96 = vld [vmem:[%s0 + $0x10] sm:$0xff]
    %v97 = vld [vmem:[%s0 + $0x18] sm:$0xff]
    %v98 = vld [vmem:[%s0 + $0x20] sm:$0xff]
    %v99 = vld [vmem:[%s0 + $0x28] sm:$0xff]
    %v100 = vld [vmem:[%s0 + $0x30] sm:$0xff]
    %v101 = vld [vmem:[%s0 + $0x38] sm:$0xff]
    %v102 = vlaneseq
    %v103 = vand.u32 %v102, 127
    %104 = vset.pattern.permute.xlu0 0
    %105 = vperm.xlu0 %104, %v94
    %v106 = vpop.permute.xlu0 %105
    %107 = vset.pattern.permute.xlu0 0
    %108 = vperm.xlu0 %107, %v95
    %v109 = vpop.permute.xlu0 %108
    %110 = vset.pattern.permute.xlu0 0
    %111 = vperm.xlu0 %110, %v96
    %v112 = vpop.permute.xlu0 %111
    %113 = vset.pattern.permute.xlu0 0
    %114 = vperm.xlu0 %113, %v97
    %v115 = vpop.permute.xlu0 %114
    %116 = vset.pattern.permute.xlu0 0
    %117 = vperm.xlu0 %116, %v98
    %v118 = vpop.permute.xlu0 %117
    %119 = vset.pattern.permute.xlu0 0
    %120 = vperm.xlu0 %119, %v99
    %v121 = vpop.permute.xlu0 %120
    %122 = vset.pattern.permute.xlu0 0
    %123 = vperm.xlu0 %122, %v100
    %v124 = vpop.permute.xlu0 %123
    %125 = vset.pattern.permute.xlu0 0
    %126 = vperm.xlu0 %125, %v101
    %v127 = vpop.permute.xlu0 %126
    %vm128 = vcmp.eq.s32.totalorder %v106, %v103
    %vm129 = vcmp.eq.s32.totalorder %v109, %v103
    %vm130 = vcmp.eq.s32.totalorder %v112, %v103
    %vm131 = vcmp.eq.s32.totalorder %v115, %v103
    %vm132 = vcmp.eq.s32.totalorder %v118, %v103
    %vm133 = vcmp.eq.s32.totalorder %v121, %v103
    %vm134 = vcmp.eq.s32.totalorder %v124, %v103
    %vm135 = vcmp.eq.s32.totalorder %v127, %v103
    %v136 = vsel %vm128, 1, 0
    %v137 = vsel %vm129, 1, 0
    %v138 = vsel %vm130, 1, 0
    %v139 = vsel %vm131, 1, 0
    %v140 = vsel %vm132, 1, 0
    %v141 = vsel %vm133, 1, 0
    %v142 = vsel %vm134, 1, 0
    %v143 = vsel %vm135, 1, 0
    %v144 = vcvt.s32.f32 %v136
    %v145 = vcvt.s32.f32 %v137
    %v146 = vcvt.s32.f32 %v138
    %v147 = vcvt.s32.f32 %v139
    %v148 = vcvt.s32.f32 %v140
    %v149 = vcvt.s32.f32 %v141
    %v150 = vcvt.s32.f32 %v142
    %v151 = vcvt.s32.f32 %v143
    %v152 = vpack.c.bf16 %v145, %v144
    %v153 = vpack.c.bf16 %v147, %v146
    %v154 = vpack.c.bf16 %v149, %v148
    %v155 = vpack.c.bf16 %v151, %v150
    %v156 = vunpack.c.l.bf16 %v33
    %v157 = vunpack.c.l.bf16 %v34
    %v158 = vunpack.c.l.bf16 %v35
    %v159 = vunpack.c.l.bf16 %v36
    %v160 = vunpack.c.l.bf16 %v37
    %v161 = vunpack.c.l.bf16 %v38
    %v162 = vunpack.c.l.bf16 %v39
    %v163 = vunpack.c.l.bf16 %v40
    %v172 = vunpack.c.l.b16 %v25
    %v173 = vunpack.c.l.b16 %v26
    %v174 = vunpack.c.l.b16 %v27
    %v175 = vunpack.c.l.b16 %v28
    %v176 = vunpack.c.l.b16 %v29
    %v177 = vunpack.c.l.b16 %v30
    %v178 = vunpack.c.l.b16 %v31
    %v179 = vunpack.c.l.b16 %v32
    %v180 = vpack.c.b16 %v173, %v172
    %v181 = vpack.c.b16 %v175, %v174
    %v182 = vpack.c.b16 %v177, %v176
    %v183 = vpack.c.b16 %v179, %v178
    %vm188 = vcmask 523264
    %v190 = vsel %vm188, %v152, 0
    %v193 = vsel %vm188, %v153, 0
    %v196 = vsel %vm188, %v154, 0
    %v199 = vsel %vm188, %v155, 0
    %201 = vmatprep.subr.bf16.mxu0 0
    %202 = vmatpush1.bf16.msra.mxu0 %v180
    %203 = vmatprep.subr.bf16.mxu0 0
    %204 = vmatpush1.bf16.msra.mxu0 %v181
    %205 = vmatprep.subr.bf16.mxu0 0
    %206 = vmatpush1.bf16.msra.mxu0 %v182
    %207 = vmatprep.subr.bf16.mxu0 0
    %208 = vmatpush1.bf16.msra.mxu0 %v183
    %209 = vmatprep.subr.bf16.mxu0 0
    %210 = vmatpush1.bf16.msra.mxu0 0
    %211 = vmatprep.subr.bf16.mxu0 0
    %212 = vmatpush1.bf16.msra.mxu0 0
    %213 = vmatprep.subr.bf16.mxu0 0
    %214 = vmatpush1.bf16.msra.mxu0 0
    %215 = vmatprep.subr.bf16.mxu0 0
    %216 = vmatpush1.bf16.msra.mxu0 0
    %217 = vmatprep.subr.bf16.mxu0 0
    %218 = vmatpush1.bf16.msra.mxu0 0
    %219 = vmatprep.subr.bf16.mxu0 0
    %220 = vmatpush1.bf16.msra.mxu0 0
    %221 = vmatprep.subr.bf16.mxu0 0
    %222 = vmatpush1.bf16.msra.mxu0 0
    %223 = vmatprep.subr.bf16.mxu0 0
    %224 = vmatpush1.bf16.msra.mxu0 0
    %225 = vmatprep.subr.bf16.mxu0 0
    %226 = vmatpush1.bf16.msra.mxu0 0
    %227 = vmatprep.subr.bf16.mxu0 0
    %228 = vmatpush1.bf16.msra.mxu0 0
    %229 = vmatprep.subr.bf16.mxu0 0
    %230 = vmatpush1.bf16.msra.mxu0 0
    %231 = vmatprep.subr.bf16.mxu0 0
    %232 = vmatpush1.bf16.msra.mxu0 0
    %233 = vmatprep.mubr.bf16.mxu0 0
    %234 = vmatmul.mubr.bf16.gmra.mrb[0].mxu0 %v190
    %v235 = vpop.f32.mrb[0].mxu0
    %v236 = vadd.f32 %v156, %v235
    %v237 = vpop.f32.mrb[0].mxu0
    %v238 = vpop.f32.mrb[0].mxu0
    %v239 = vadd.f32 %v157, %v238
    %v240 = vpop.f32.mrb[0].mxu0
    %241 = vmatprep.mubr.bf16.mxu0 0
    %242 = vmatmul.mubr.bf16.gmra.mrb[0].mxu0 %v193
    %v243 = vpop.f32.mrb[0].mxu0
    %v244 = vadd.f32 %v158, %v243
    %v245 = vpop.f32.mrb[0].mxu0
    %v246 = vpop.f32.mrb[0].mxu0
    %v247 = vadd.f32 %v159, %v246
    %v248 = vpop.f32.mrb[0].mxu0
    %249 = vmatprep.mubr.bf16.mxu0 0
    %250 = vmatmul.mubr.bf16.gmra.mrb[0].mxu0 %v196
    %v251 = vpop.f32.mrb[0].mxu0
    %v252 = vadd.f32 %v160, %v251
    %v253 = vpop.f32.mrb[0].mxu0
    %v254 = vpop.f32.mrb[0].mxu0
    %v255 = vadd.f32 %v161, %v254
    %v256 = vpop.f32.mrb[0].mxu0
    %257 = vmatprep.mubr.bf16.mxu0 0
    %258 = vmatmul.mubr.bf16.gmra.mrb[0].mxu0 %v199
    %v259 = vpop.f32.mrb[0].mxu0
    %v260 = vadd.f32 %v162, %v259
    %v261 = vpop.f32.mrb[0].mxu0
    %v262 = vpop.f32.mrb[0].mxu0
    %v263 = vadd.f32 %v163, %v262
    %v264 = vpop.f32.mrb[0].mxu0
    %265 = vdwg.mxu0
    %vm266 = vcmask 261120
    %v267 = vsel %vm266, %v236, 0.0
    %268 = vadd.xlane.f32.xlu0 %v267
    %v269 = vpop.xlane.xlu0 %268
    %v270 = vsel %vm266, %v239, 0.0
    %271 = vadd.xlane.f32.xlu0 %v270
    %v272 = vpop.xlane.xlu0 %271
    %v273 = vsel %vm266, %v244, 0.0
    %274 = vadd.xlane.f32.xlu0 %v273
    %v275 = vpop.xlane.xlu0 %274
    %v276 = vsel %vm266, %v247, 0.0
    %277 = vadd.xlane.f32.xlu0 %v276
    %v278 = vpop.xlane.xlu0 %277
    %v279 = vsel %vm266, %v252, 0.0
    %280 = vadd.xlane.f32.xlu0 %v279
    %v281 = vpop.xlane.xlu0 %280
    %v282 = vsel %vm266, %v255, 0.0
    %283 = vadd.xlane.f32.xlu0 %v282
    %v284 = vpop.xlane.xlu0 %283
    %v285 = vsel %vm266, %v260, 0.0
    %286 = vadd.xlane.f32.xlu0 %v285
    %v287 = vpop.xlane.xlu0 %286
    %v288 = vsel %vm266, %v263, 0.0
    %289 = vadd.xlane.f32.xlu0 %v288
    %v290 = vpop.xlane.xlu0 %289
    %v291 = vrcp.pop 32.0
    %v292 = vmul.f32 %v269, %v291
    %v293 = vmul.f32 %v272, %v291
    %v294 = vmul.f32 %v275, %v291
    %v295 = vmul.f32 %v278, %v291
    %v296 = vmul.f32 %v281, %v291
    %v297 = vmul.f32 %v284, %v291
    %v298 = vmul.f32 %v287, %v291
    %v299 = vmul.f32 %v290, %v291
    %v300 = vsub.f32 %v236, %v292
    %v301 = vsub.f32 %v239, %v293
    %v302 = vsub.f32 %v244, %v294
    %v303 = vsub.f32 %v247, %v295
    %v304 = vsub.f32 %v252, %v296
    %v305 = vsub.f32 %v255, %v297
    %v306 = vsub.f32 %v260, %v298
    %v307 = vsub.f32 %v263, %v299
    %v308 = vmul.f32 %v300, %v300
    %v309 = vmul.f32 %v301, %v301
    %v310 = vmul.f32 %v302, %v302
    %v311 = vmul.f32 %v303, %v303
    %v312 = vmul.f32 %v304, %v304
    %v313 = vmul.f32 %v305, %v305
    %v314 = vmul.f32 %v306, %v306
    %v315 = vmul.f32 %v307, %v307
    %v316 = vsel %vm266, %v308, 0.0
    %317 = vadd.xlane.f32.xlu0 %v316
    %v318 = vpop.xlane.xlu0 %317
    %v319 = vsel %vm266, %v309, 0.0
    %320 = vadd.xlane.f32.xlu0 %v319
    %v321 = vpop.xlane.xlu0 %320
    %v322 = vsel %vm266, %v310, 0.0
    %323 = vadd.xlane.f32.xlu0 %v322
    %v324 = vpop.xlane.xlu0 %323
    %v325 = vsel %vm266, %v311, 0.0
    %326 = vadd.xlane.f32.xlu0 %v325
    %v327 = vpop.xlane.xlu0 %326
    %v328 = vsel %vm266, %v312, 0.0
    %329 = vadd.xlane.f32.xlu0 %v328
    %v330 = vpop.xlane.xlu0 %329
    %v331 = vsel %vm266, %v313, 0.0
    %332 = vadd.xlane.f32.xlu0 %v331
    %v333 = vpop.xlane.xlu0 %332
    %v334 = vsel %vm266, %v314, 0.0
    %335 = vadd.xlane.f32.xlu0 %v334
    %v336 = vpop.xlane.xlu0 %335
    %v337 = vsel %vm266, %v315, 0.0
    %338 = vadd.xlane.f32.xlu0 %v337
    %v339 = vpop.xlane.xlu0 %338
    %v340 = vmul.f32 %v318, %v291
    %v341 = vmul.f32 %v321, %v291
    %v342 = vmul.f32 %v324, %v291
    %v343 = vmul.f32 %v327, %v291
    %v344 = vmul.f32 %v330, %v291
    %v345 = vmul.f32 %v333, %v291
    %v346 = vmul.f32 %v336, %v291
    %v347 = vmul.f32 %v339, %v291
    %v348 = vadd.f32 %v340, 1e-12
    %v349 = vadd.f32 %v341, 1e-12
    %v350 = vadd.f32 %v342, 1e-12
    %v351 = vadd.f32 %v343, 1e-12
    %v352 = vadd.f32 %v344, 1e-12
    %v353 = vadd.f32 %v345, 1e-12
    %v354 = vadd.f32 %v346, 1e-12
    %v355 = vadd.f32 %v347, 1e-12
    %v356 = vrsqrt.pop %v348
    %v357 = vrsqrt.pop %v349
    %v358 = vrsqrt.pop %v350
    %v359 = vrsqrt.pop %v351
    %v360 = vrsqrt.pop %v352
    %v361 = vrsqrt.pop %v353
    %v362 = vrsqrt.pop %v354
    %v363 = vrsqrt.pop %v355
    %v364 = vmul.f32 %v300, %v356
    %v365 = vmul.f32 %v301, %v357
    %v366 = vmul.f32 %v302, %v358
    %v367 = vmul.f32 %v303, %v359
    %v368 = vmul.f32 %v304, %v360
    %v369 = vmul.f32 %v305, %v361
    %v370 = vmul.f32 %v306, %v362
    %v371 = vmul.f32 %v307, %v363
    %v372 = vlaneseq
    %v373 = vshrl.u32 %v372, 7
    %v374 = vsub.s32 0, %v373
    %v375 = vrot.slane %v65, %v374
    %v376 = vmul.f32 %v364, %v375
    %v377 = vmul.f32 %v365, %v375
    %v378 = vmul.f32 %v366, %v375
    %v379 = vmul.f32 %v367, %v375
    %v380 = vmul.f32 %v368, %v375
    %v381 = vmul.f32 %v369, %v375
    %v382 = vmul.f32 %v370, %v375
    %v383 = vmul.f32 %v371, %v375
    %v384 = vlaneseq
    %v385 = vshrl.u32 %v384, 7
    %v386 = vsub.s32 0, %v385
    %v387 = vrot.slane %v66, %v386
    %v388 = vadd.f32 %v376, %v387
    %v389 = vadd.f32 %v377, %v387
    %v390 = vadd.f32 %v378, %v387
    %v391 = vadd.f32 %v379, %v387
    %v392 = vadd.f32 %v380, %v387
    %v393 = vadd.f32 %v381, %v387
    %v394 = vadd.f32 %v382, %v387
    %v395 = vadd.f32 %v383, %v387
    %v396 = vpack.c.bf16 %v389, %v388
    %v397 = vpack.c.bf16 %v391, %v390
    %v398 = vpack.c.bf16 %v393, %v392
    %v399 = vpack.c.bf16 %v395, %v394
    %v404 = vunpack.c.l.b16 %v57
    %v405 = vunpack.c.l.b16 %v58
    %v406 = vunpack.c.l.b16 %v59
    %v407 = vunpack.c.l.b16 %v60
    %v408 = vpack.c.b16 %v405, %v404
    %v409 = vpack.c.b16 %v407, %v406
    %v413 = vsel %vm266, %v396, 0
    %v416 = vsel %vm266, %v397, 0
    %v419 = vsel %vm266, %v398, 0
    %v422 = vsel %vm266, %v399, 0
    %424 = vmatprep.subr.bf16.mxu0 0
    %425 = vmatpush1.bf16.msra.mxu0 %v408
    %426 = vmatprep.subr.bf16.mxu0 0
    %427 = vmatpush1.bf16.msra.mxu0 %v409
    %428 = vmatprep.subr.bf16.mxu0 0
    %429 = vmatpush1.bf16.msra.mxu0 0
    %430 = vmatprep.subr.bf16.mxu0 0
    %431 = vmatpush1.bf16.msra.mxu0 0
    %432 = vmatprep.subr.bf16.mxu0 0
    %433 = vmatpush1.bf16.msra.mxu0 0
    %434 = vmatprep.subr.bf16.mxu0 0
    %435 = vmatpush1.bf16.msra.mxu0 0
    %436 = vmatprep.subr.bf16.mxu0 0
    %437 = vmatpush1.bf16.msra.mxu0 0
    %438 = vmatprep.subr.bf16.mxu0 0
    %439 = vmatpush1.bf16.msra.mxu0 0
    %440 = vmatprep.subr.bf16.mxu0 0
    %441 = vmatpush1.bf16.msra.mxu0 0
    %442 = vmatprep.subr.bf16.mxu0 0
    %443 = vmatpush1.bf16.msra.mxu0 0
    %444 = vmatprep.subr.bf16.mxu0 0
    %445 = vmatpush1.bf16.msra.mxu0 0
    %446 = vmatprep.subr.bf16.mxu0 0
    %447 = vmatpush1.bf16.msra.mxu0 0
    %448 = vmatprep.subr.bf16.mxu0 0
    %449 = vmatpush1.bf16.msra.mxu0 0
    %450 = vmatprep.subr.bf16.mxu0 0
    %451 = vmatpush1.bf16.msra.mxu0 0
    %452 = vmatprep.subr.bf16.mxu0 0
    %453 = vmatpush1.bf16.msra.mxu0 0
    %454 = vmatprep.subr.bf16.mxu0 0
    %455 = vmatpush1.bf16.msra.mxu0 0
    %456 = vmatprep.mubr.bf16.mxu0 0
    %457 = vmatmul.mubr.bf16.gmra.mrb[0].mxu0 %v413
    %v458 = vpop.f32.mrb[0].mxu0
    %v459 = vadd.f32 0.0, %v458
    %v460 = vpop.f32.mrb[0].mxu0
    %v461 = vpop.f32.mrb[0].mxu0
    %v462 = vadd.f32 0.0, %v461
    %v463 = vpop.f32.mrb[0].mxu0
    %464 = vmatprep.mubr.bf16.mxu0 0
    %465 = vmatmul.mubr.bf16.gmra.mrb[0].mxu0 %v416
    %v466 = vpop.f32.mrb[0].mxu0
    %v467 = vadd.f32 0.0, %v466
    %v468 = vpop.f32.mrb[0].mxu0
    %v469 = vpop.f32.mrb[0].mxu0
    %v470 = vadd.f32 0.0, %v469
    %v471 = vpop.f32.mrb[0].mxu0
    %472 = vmatprep.mubr.bf16.mxu0 0
    %473 = vmatmul.mubr.bf16.gmra.mrb[0].mxu0 %v419
    %v474 = vpop.f32.mrb[0].mxu0
    %v475 = vadd.f32 0.0, %v474
    %v476 = vpop.f32.mrb[0].mxu0
    %v477 = vpop.f32.mrb[0].mxu0
    %v478 = vadd.f32 0.0, %v477
    %v479 = vpop.f32.mrb[0].mxu0
    %480 = vmatprep.mubr.bf16.mxu0 0
    %481 = vmatmul.mubr.bf16.gmra.mrb[0].mxu0 %v422
    %v482 = vpop.f32.mrb[0].mxu0
    %v483 = vadd.f32 0.0, %v482
    %v484 = vpop.f32.mrb[0].mxu0
    %v485 = vpop.f32.mrb[0].mxu0
    %v486 = vadd.f32 0.0, %v485
    %v487 = vpop.f32.mrb[0].mxu0
    %488 = vdwg.mxu0
    %v489 = vlaneseq
    %v490 = vshrl.u32 %v489, 7
    %v491 = vsub.s32 0, %v490
    %v492 = vrot.slane %v67, %v491
    %v493 = vadd.f32 %v459, %v492
    %v494 = vadd.f32 %v462, %v492
    %v495 = vadd.f32 %v467, %v492
    %v496 = vadd.f32 %v470, %v492
    %v497 = vadd.f32 %v475, %v492
    %v498 = vadd.f32 %v478, %v492
    %v499 = vadd.f32 %v483, %v492
    %v500 = vadd.f32 %v486, %v492
    %v501 = vmul.f32 %v493, 0.17677669
    %v502 = vmul.f32 %v494, 0.17677669
    %v503 = vmul.f32 %v495, 0.17677669
    %v504 = vmul.f32 %v496, 0.17677669
    %v505 = vmul.f32 %v497, 0.17677669
    %v506 = vmul.f32 %v498, 0.17677669
    %v507 = vmul.f32 %v499, 0.17677669
    %v508 = vmul.f32 %v500, 0.17677669
    %v509 = vlaneseq
    %v510 = vshrl.u32 %v509, 7
    %v511 = vsub.s32 0, %v510
    %v512 = vrot.slane %v68, %v511
    %514 = vrot.lane.b32.xlu0 %v512, 32
    %v515 = vpop.permute.xlu0 %514
    %v517 = vadd.f32 %v459, %v515
    %v518 = vadd.f32 %v462, %v515
    %v519 = vadd.f32 %v467, %v515
    %v520 = vadd.f32 %v470, %v515
    %v521 = vadd.f32 %v475, %v515
    %v522 = vadd.f32 %v478, %v515
    %v523 = vadd.f32 %v483, %v515
    %v524 = vadd.f32 %v486, %v515
    %v525 = vlaneseq
    %v526 = vshrl.u32 %v525, 7
    %v527 = vsub.s32 0, %v526
    %v528 = vrot.slane %v69, %v527
    %530 = vrot.lane.b32.xlu0 %v528, 64
    %v531 = vpop.permute.xlu0 %530
    %v533 = vadd.f32 %v459, %v531
    %v534 = vadd.f32 %v462, %v531
    %v535 = vadd.f32 %v467, %v531
    %v536 = vadd.f32 %v470, %v531
    %v537 = vadd.f32 %v475, %v531
    %v538 = vadd.f32 %v478, %v531
    %v539 = vadd.f32 %v483, %v531
    %v540 = vadd.f32 %v486, %v531
    %v541 = vpack.c.bf16 %v502, %v501
    %v542 = vpack.c.bf16 %v504, %v503
    %v543 = vpack.c.bf16 %v506, %v505
    %v544 = vpack.c.bf16 %v508, %v507
    %v545 = vpack.c.bf16 %v518, %v517
    %v546 = vpack.c.bf16 %v520, %v519
    %v547 = vpack.c.bf16 %v522, %v521
    %v548 = vpack.c.bf16 %v524, %v523
    %553 = vrot.lane.b32.xlu0 %v545, 96
    %v554 = vpop.permute.xlu0 %553
    %555 = vrot.lane.b32.xlu0 %v546, 96
    %v556 = vpop.permute.xlu0 %555
    %557 = vrot.lane.b32.xlu0 %v547, 96
    %v558 = vpop.permute.xlu0 %557
    %559 = vrot.lane.b32.xlu0 %v548, 96
    %v560 = vpop.permute.xlu0 %559
    %v562 = vsel %vm266, %v541, 0
    %v565 = vsel %vm266, %v542, 0
    %v568 = vsel %vm266, %v543, 0
    %v571 = vsel %vm266, %v544, 0
    %v574 = vsel %vm266, %v554, 0
    %v577 = vsel %vm266, %v556, 0
    %v580 = vsel %vm266, %v558, 0
    %v583 = vsel %vm266, %v560, 0
    %585 = vmatprep.subr.bf16.mxu0 0
    %586 = vmatpush1.bf16.xpose.msra.mxu0 %v574
    %587 = vmatprep.subr.bf16.mxu0 0
    %588 = vmatpush1.bf16.xpose.msra.mxu0 %v577
    %589 = vmatprep.subr.bf16.mxu0 0
    %590 = vmatpush1.bf16.xpose.msra.mxu0 %v580
    %591 = vmatprep.subr.bf16.mxu0 0
    %592 = vmatpush1.bf16.xpose.msra.mxu0 %v583
    %593 = vmatprep.subr.bf16.mxu0 0
    %594 = vmatpush1.bf16.xpose.msra.mxu0 0
    %595 = vmatprep.subr.bf16.mxu0 0
    %596 = vmatpush1.bf16.xpose.msra.mxu0 0
    %597 = vmatprep.subr.bf16.mxu0 0
    %598 = vmatpush1.bf16.xpose.msra.mxu0 0
    %599 = vmatprep.subr.bf16.mxu0 0
    %600 = vmatpush1.bf16.xpose.msra.mxu0 0
    %601 = vmatprep.subr.bf16.mxu0 0
    %602 = vmatpush1.bf16.xpose.msra.mxu0 0
    %603 = vmatprep.subr.bf16.mxu0 0
    %604 = vmatpush1.bf16.xpose.msra.mxu0 0
    %605 = vmatprep.subr.bf16.mxu0 0
    %606 = vmatpush1.bf16.xpose.msra.mxu0 0
    %607 = vmatprep.subr.bf16.mxu0 0
    %608 = vmatpush1.bf16.xpose.msra.mxu0 0
    %609 = vmatprep.subr.bf16.mxu0 0
    %610 = vmatpush1.bf16.xpose.msra.mxu0 0
    %611 = vmatprep.subr.bf16.mxu0 0
    %612 = vmatpush1.bf16.xpose.msra.mxu0 0
    %613 = vmatprep.subr.bf16.mxu0 0
    %614 = vmatpush1.bf16.xpose.msra.mxu0 0
    %615 = vmatprep.subr.bf16.mxu0 0
    %616 = vmatpush1.bf16.xpose.msra.mxu0 0
    %617 = vmatprep.mubr.bf16.mxu0 0
    %618 = vmatmul.mubr.bf16.gmra.mrb[0].mxu0 %v562
    %v619 = vpop.f32.mrb[0].mxu0
    %v620 = vadd.f32 %v84, %v619
    %v621 = vpop.f32.mrb[0].mxu0
    %v622 = vpop.f32.mrb[0].mxu0
    %v623 = vadd.f32 %v85, %v622
    %v624 = vpop.f32.mrb[0].mxu0
    %625 = vmatprep.mubr.bf16.mxu0 0
    %626 = vmatmul.mubr.bf16.gmra.mrb[0].mxu0 %v565
    %v627 = vpop.f32.mrb[0].mxu0
    %v628 = vadd.f32 %v86, %v627
    %v629 = vpop.f32.mrb[0].mxu0
    %v630 = vpop.f32.mrb[0].mxu0
    %v631 = vadd.f32 %v87, %v630
    %v632 = vpop.f32.mrb[0].mxu0
    %633 = vmatprep.mubr.bf16.mxu0 0
    %634 = vmatmul.mubr.bf16.gmra.mrb[0].mxu0 %v568
    %v635 = vpop.f32.mrb[0].mxu0
    %v636 = vadd.f32 %v88, %v635
    %v637 = vpop.f32.mrb[0].mxu0
    %v638 = vpop.f32.mrb[0].mxu0
    %v639 = vadd.f32 %v89, %v638
    %v640 = vpop.f32.mrb[0].mxu0
    %641 = vmatprep.mubr.bf16.mxu0 0
    %642 = vmatmul.mubr.bf16.gmra.mrb[0].mxu0 %v571
    %v643 = vpop.f32.mrb[0].mxu0
    %v644 = vadd.f32 %v90, %v643
    %v645 = vpop.f32.mrb[0].mxu0
    %v646 = vpop.f32.mrb[0].mxu0
    %v647 = vadd.f32 %v91, %v646
    %v648 = vpop.f32.mrb[0].mxu0
    %649 = vdwg.mxu0
    %v650 = vld [vmem:[%s1] sm:$0x1]
    %v652 = vlaneseq
    %v653 = vshrl.u32 %v652, 7
    %v654 = vsub.s32 0, %v653
    %v655 = vrot.slane %v650, %v654
    %v657 = vadd.f32 %v620, %v655
    %v658 = vadd.f32 %v623, %v655
    %v659 = vadd.f32 %v628, %v655
    %v660 = vadd.f32 %v631, %v655
    %v661 = vadd.f32 %v636, %v655
    %v662 = vadd.f32 %v639, %v655
    %v663 = vadd.f32 %v644, %v655
    %v664 = vadd.f32 %v647, %v655
    %v665 = vsel %vm188, %v657, -inf
    %666 = vmax.xlane.f32.xlu0 %v665
    %v667 = vpop.xlane.xlu0 %666
    %v668 = vsel %vm188, %v658, -inf
    %669 = vmax.xlane.f32.xlu0 %v668
    %v670 = vpop.xlane.xlu0 %669
    %v671 = vsel %vm188, %v659, -inf
    %672 = vmax.xlane.f32.xlu0 %v671
    %v673 = vpop.xlane.xlu0 %672
    %v674 = vsel %vm188, %v660, -inf
    %675 = vmax.xlane.f32.xlu0 %v674
    %v676 = vpop.xlane.xlu0 %675
    %v677 = vsel %vm188, %v661, -inf
    %678 = vmax.xlane.f32.xlu0 %v677
    %v679 = vpop.xlane.xlu0 %678
    %v680 = vsel %vm188, %v662, -inf
    %681 = vmax.xlane.f32.xlu0 %v680
    %v682 = vpop.xlane.xlu0 %681
    %v683 = vsel %vm188, %v663, -inf
    %684 = vmax.xlane.f32.xlu0 %v683
    %v685 = vpop.xlane.xlu0 %684
    %v686 = vsel %vm188, %v664, -inf
    %687 = vmax.xlane.f32.xlu0 %v686
    %v688 = vpop.xlane.xlu0 %687
    %v689 = vsub.f32 %v657, %v667
    %v690 = vsub.f32 %v658, %v670
    %v691 = vsub.f32 %v659, %v673
    %v692 = vsub.f32 %v660, %v676
    %v693 = vsub.f32 %v661, %v679
    %v694 = vsub.f32 %v662, %v682
    %v695 = vsub.f32 %v663, %v685
    %v696 = vsub.f32 %v664, %v688
    %v697 = vmul.f32 %v689, 1.442695
    %v698 = vpow.pop %v697
    %v699 = vmul.f32 %v690, 1.442695
    %v700 = vpow.pop %v699
    %v701 = vmul.f32 %v691, 1.442695
    %v702 = vpow.pop %v701
    %v703 = vmul.f32 %v692, 1.442695
    %v704 = vpow.pop %v703
    %v705 = vmul.f32 %v693, 1.442695
    %v706 = vpow.pop %v705
    %v707 = vmul.f32 %v694, 1.442695
    %v708 = vpow.pop %v707
    %v709 = vmul.f32 %v695, 1.442695
    %v710 = vpow.pop %v709
    %v711 = vmul.f32 %v696, 1.442695
    %v712 = vpow.pop %v711
    %v713 = vsel %vm188, %v698, 0.0
    %714 = vadd.xlane.f32.xlu0 %v713
    %v715 = vpop.xlane.xlu0 %714
    %v716 = vsel %vm188, %v700, 0.0
    %717 = vadd.xlane.f32.xlu0 %v716
    %v718 = vpop.xlane.xlu0 %717
    %v719 = vsel %vm188, %v702, 0.0
    %720 = vadd.xlane.f32.xlu0 %v719
    %v721 = vpop.xlane.xlu0 %720
    %v722 = vsel %vm188, %v704, 0.0
    %723 = vadd.xlane.f32.xlu0 %v722
    %v724 = vpop.xlane.xlu0 %723
    %v725 = vsel %vm188, %v706, 0.0
    %726 = vadd.xlane.f32.xlu0 %v725
    %v727 = vpop.xlane.xlu0 %726
    %v728 = vsel %vm188, %v708, 0.0
    %729 = vadd.xlane.f32.xlu0 %v728
    %v730 = vpop.xlane.xlu0 %729
    %v731 = vsel %vm188, %v710, 0.0
    %732 = vadd.xlane.f32.xlu0 %v731
    %v733 = vpop.xlane.xlu0 %732
    %v734 = vsel %vm188, %v712, 0.0
    %735 = vadd.xlane.f32.xlu0 %v734
    %v736 = vpop.xlane.xlu0 %735
    %v737 = vrcp.pop %v715
    %v738 = vrcp.pop %v718
    %v739 = vrcp.pop %v721
    %v740 = vrcp.pop %v724
    %v741 = vrcp.pop %v727
    %v742 = vrcp.pop %v730
    %v743 = vrcp.pop %v733
    %v744 = vrcp.pop %v736
    %v745 = vmul.f32 %v698, %v737
    %v746 = vmul.f32 %v700, %v738
    %v747 = vmul.f32 %v702, %v739
    %v748 = vmul.f32 %v704, %v740
    %v749 = vmul.f32 %v706, %v741
    %v750 = vmul.f32 %v708, %v742
    %v751 = vmul.f32 %v710, %v743
    %v752 = vmul.f32 %v712, %v744
    %v753 = vpack.c.bf16 %v746, %v745
    %v754 = vpack.c.bf16 %v748, %v747
    %v755 = vpack.c.bf16 %v750, %v749
    %v756 = vpack.c.bf16 %v752, %v751
    %v757 = vpack.c.bf16 %v534, %v533
    %v758 = vpack.c.bf16 %v536, %v535
    %v759 = vpack.c.bf16 %v538, %v537
    %v760 = vpack.c.bf16 %v540, %v539
    %765 = vrot.lane.b32.xlu0 %v757, 64
    %v766 = vpop.permute.xlu0 %765
    %767 = vrot.lane.b32.xlu0 %v758, 64
    %v768 = vpop.permute.xlu0 %767
    %769 = vrot.lane.b32.xlu0 %v759, 64
    %v770 = vpop.permute.xlu0 %769
    %771 = vrot.lane.b32.xlu0 %v760, 64
    %v772 = vpop.permute.xlu0 %771
    %v778 = vsel %vm188, %v753, 0
    %v781 = vsel %vm188, %v754, 0
    %v784 = vsel %vm188, %v755, 0
    %v787 = vsel %vm188, %v756, 0
    %789 = vmatprep.subr.bf16.mxu0 0
    %790 = vmatpush1.bf16.msra.mxu0 %v766
    %791 = vmatprep.subr.bf16.mxu0 0
    %792 = vmatpush1.bf16.msra.mxu0 %v768
    %793 = vmatprep.subr.bf16.mxu0 0
    %794 = vmatpush1.bf16.msra.mxu0 %v770
    %795 = vmatprep.subr.bf16.mxu0 0
    %796 = vmatpush1.bf16.msra.mxu0 %v772
    %797 = vmatprep.subr.bf16.mxu0 0
    %798 = vmatpush1.bf16.msra.mxu0 0
    %799 = vmatprep.subr.bf16.mxu0 0
    %800 = vmatpush1.bf16.msra.mxu0 0
    %801 = vmatprep.subr.bf16.mxu0 0
    %802 = vmatpush1.bf16.msra.mxu0 0
    %803 = vmatprep.subr.bf16.mxu0 0
    %804 = vmatpush1.bf16.msra.mxu0 0
    %805 = vmatprep.subr.bf16.mxu0 0
    %806 = vmatpush1.bf16.msra.mxu0 0
    %807 = vmatprep.subr.bf16.mxu0 0
    %808 = vmatpush1.bf16.msra.mxu0 0
    %809 = vmatprep.subr.bf16.mxu0 0
    %810 = vmatpush1.bf16.msra.mxu0 0
    %811 = vmatprep.subr.bf16.mxu0 0
    %812 = vmatpush1.bf16.msra.mxu0 0
    %813 = vmatprep.subr.bf16.mxu0 0
    %814 = vmatpush1.bf16.msra.mxu0 0
    %815 = vmatprep.subr.bf16.mxu0 0
    %816 = vmatpush1.bf16.msra.mxu0 0
    %817 = vmatprep.subr.bf16.mxu0 0
    %818 = vmatpush1.bf16.msra.mxu0 0
    %819 = vmatprep.subr.bf16.mxu0 0
    %820 = vmatpush1.bf16.msra.mxu0 0
    %821 = vmatprep.mubr.bf16.mxu0 0
    %822 = vmatmul.mubr.bf16.gmra.mrb[0].mxu0 %v778
    %v823 = vpop.f32.mrb[0].mxu0
    %v824 = vadd.f32 0.0, %v823
    %v825 = vpop.f32.mrb[0].mxu0
    %v826 = vpop.f32.mrb[0].mxu0
    %v827 = vadd.f32 0.0, %v826
    %v828 = vpop.f32.mrb[0].mxu0
    %829 = vmatprep.mubr.bf16.mxu0 0
    %830 = vmatmul.mubr.bf16.gmra.mrb[0].mxu0 %v781
    %v831 = vpop.f32.mrb[0].mxu0
    %v832 = vadd.f32 0.0, %v831
    %v833 = vpop.f32.mrb[0].mxu0
    %v834 = vpop.f32.mrb[0].mxu0
    %v835 = vadd.f32 0.0, %v834
    %v836 = vpop.f32.mrb[0].mxu0
    %837 = vmatprep.mubr.bf16.mxu0 0
    %838 = vmatmul.mubr.bf16.gmra.mrb[0].mxu0 %v784
    %v839 = vpop.f32.mrb[0].mxu0
    %v840 = vadd.f32 0.0, %v839
    %v841 = vpop.f32.mrb[0].mxu0
    %v842 = vpop.f32.mrb[0].mxu0
    %v843 = vadd.f32 0.0, %v842
    %v844 = vpop.f32.mrb[0].mxu0
    %845 = vmatprep.mubr.bf16.mxu0 0
    %846 = vmatmul.mubr.bf16.gmra.mrb[0].mxu0 %v787
    %v847 = vpop.f32.mrb[0].mxu0
    %v848 = vadd.f32 0.0, %v847
    %v849 = vpop.f32.mrb[0].mxu0
    %v850 = vpop.f32.mrb[0].mxu0
    %v851 = vadd.f32 0.0, %v850
    %v852 = vpop.f32.mrb[0].mxu0
    %853 = vdwg.mxu0
    %v854 = vpack.c.bf16 %v827, %v824
    %v855 = vpack.c.bf16 %v835, %v832
    %v856 = vpack.c.bf16 %v843, %v840
    %v857 = vpack.c.bf16 %v851, %v848
    %v858 = vlaneseq
    %v859 = vshrl.u32 %v858, 7
    %v860 = vsub.s32 0, %v859
    %v861 = vrot.slane %v70, %v860
    %v866 = vunpack.c.l.b16 %v41
    %v867 = vunpack.c.l.b16 %v42
    %v868 = vunpack.c.l.b16 %v43
    %v869 = vunpack.c.l.b16 %v44
    %v870 = vpack.c.b16 %v867, %v866
    %v871 = vpack.c.b16 %v869, %v868
    %v875 = vsel %vm266, %v854, 0
    %v878 = vsel %vm266, %v855, 0
    %v881 = vsel %vm266, %v856, 0
    %v884 = vsel %vm266, %v857, 0
    %886 = vmatprep.subr.bf16.mxu0 0
    %887 = vmatpush1.bf16.msra.mxu0 %v870
    %888 = vmatprep.subr.bf16.mxu0 0
    %889 = vmatpush1.bf16.msra.mxu0 %v871
    %890 = vmatprep.subr.bf16.mxu0 0
    %891 = vmatpush1.bf16.msra.mxu0 0
    %892 = vmatprep.subr.bf16.mxu0 0
    %893 = vmatpush1.bf16.msra.mxu0 0
    %894 = vmatprep.subr.bf16.mxu0 0
    %895 = vmatpush1.bf16.msra.mxu0 0
    %896 = vmatprep.subr.bf16.mxu0 0
    %897 = vmatpush1.bf16.msra.mxu0 0
    %898 = vmatprep.subr.bf16.mxu0 0
    %899 = vmatpush1.bf16.msra.mxu0 0
    %900 = vmatprep.subr.bf16.mxu0 0
    %901 = vmatpush1.bf16.msra.mxu0 0
    %902 = vmatprep.subr.bf16.mxu0 0
    %903 = vmatpush1.bf16.msra.mxu0 0
    %904 = vmatprep.subr.bf16.mxu0 0
    %905 = vmatpush1.bf16.msra.mxu0 0
    %906 = vmatprep.subr.bf16.mxu0 0
    %907 = vmatpush1.bf16.msra.mxu0 0
    %908 = vmatprep.subr.bf16.mxu0 0
    %909 = vmatpush1.bf16.msra.mxu0 0
    %910 = vmatprep.subr.bf16.mxu0 0
    %911 = vmatpush1.bf16.msra.mxu0 0
    %912 = vmatprep.subr.bf16.mxu0 0
    %913 = vmatpush1.bf16.msra.mxu0 0
    %914 = vmatprep.subr.bf16.mxu0 0
    %915 = vmatpush1.bf16.msra.mxu0 0
    %916 = vmatprep.subr.bf16.mxu0 0
    %917 = vmatpush1.bf16.msra.mxu0 0
    %918 = vmatprep.mubr.bf16.mxu0 0
    %919 = vmatmul.mubr.bf16.gmra.mrb[0].mxu0 %v875
    %v920 = vpop.f32.mrb[0].mxu0
    %v921 = vadd.f32 %v861, %v920
    %v922 = vpop.f32.mrb[0].mxu0
    %v923 = vpop.f32.mrb[0].mxu0
    %v924 = vadd.f32 %v861, %v923
    %v925 = vpop.f32.mrb[0].mxu0
    %926 = vmatprep.mubr.bf16.mxu0 0
    %927 = vmatmul.mubr.bf16.gmra.mrb[0].mxu0 %v878
    %v928 = vpop.f32.mrb[0].mxu0
    %v929 = vadd.f32 %v861, %v928
    %v930 = vpop.f32.mrb[0].mxu0
    %v931 = vpop.f32.mrb[0].mxu0
    %v932 = vadd.f32 %v861, %v931
    %v933 = vpop.f32.mrb[0].mxu0
    %934 = vmatprep.mubr.bf16.mxu0 0
    %935 = vmatmul.mubr.bf16.gmra.mrb[0].mxu0 %v881
    %v936 = vpop.f32.mrb[0].mxu0
    %v937 = vadd.f32 %v861, %v936
    %v938 = vpop.f32.mrb[0].mxu0
    %v939 = vpop.f32.mrb[0].mxu0
    %v940 = vadd.f32 %v861, %v939
    %v941 = vpop.f32.mrb[0].mxu0
    %942 = vmatprep.mubr.bf16.mxu0 0
    %943 = vmatmul.mubr.bf16.gmra.mrb[0].mxu0 %v884
    %v944 = vpop.f32.mrb[0].mxu0
    %v945 = vadd.f32 %v861, %v944
    %v946 = vpop.f32.mrb[0].mxu0
    %v947 = vpop.f32.mrb[0].mxu0
    %v948 = vadd.f32 %v861, %v947
    %v949 = vpop.f32.mrb[0].mxu0
    %950 = vdwg.mxu0
    %v951 = vadd.f32 %v388, %v921
    %v952 = vadd.f32 %v389, %v924
    %v953 = vadd.f32 %v390, %v929
    %v954 = vadd.f32 %v391, %v932
    %v955 = vadd.f32 %v392, %v937
    %v956 = vadd.f32 %v393, %v940
    %v957 = vadd.f32 %v394, %v945
    %v958 = vadd.f32 %v395, %v948
    %v959 = vsel %vm266, %v951, 0.0
    %960 = vadd.xlane.f32.xlu0 %v959
    %v961 = vpop.xlane.xlu0 %960
    %v962 = vsel %vm266, %v952, 0.0
    %963 = vadd.xlane.f32.xlu0 %v962
    %v964 = vpop.xlane.xlu0 %963
    %v965 = vsel %vm266, %v953, 0.0
    %966 = vadd.xlane.f32.xlu0 %v965
    %v967 = vpop.xlane.xlu0 %966
    %v968 = vsel %vm266, %v954, 0.0
    %969 = vadd.xlane.f32.xlu0 %v968
    %v970 = vpop.xlane.xlu0 %969
    %v971 = vsel %vm266, %v955, 0.0
    %972 = vadd.xlane.f32.xlu0 %v971
    %v973 = vpop.xlane.xlu0 %972
    %v974 = vsel %vm266, %v956, 0.0
    %975 = vadd.xlane.f32.xlu0 %v974
    %v976 = vpop.xlane.xlu0 %975
    %v977 = vsel %vm266, %v957, 0.0
    %978 = vadd.xlane.f32.xlu0 %v977
    %v979 = vpop.xlane.xlu0 %978
    %v980 = vsel %vm266, %v958, 0.0
    %981 = vadd.xlane.f32.xlu0 %v980
    %v982 = vpop.xlane.xlu0 %981
    %v983 = vmul.f32 %v961, %v291
    %v984 = vmul.f32 %v964, %v291
    %v985 = vmul.f32 %v967, %v291
    %v986 = vmul.f32 %v970, %v291
    %v987 = vmul.f32 %v973, %v291
    %v988 = vmul.f32 %v976, %v291
    %v989 = vmul.f32 %v979, %v291
    %v990 = vmul.f32 %v982, %v291
    %v991 = vsub.f32 %v951, %v983
    %v992 = vsub.f32 %v952, %v984
    %v993 = vsub.f32 %v953, %v985
    %v994 = vsub.f32 %v954, %v986
    %v995 = vsub.f32 %v955, %v987
    %v996 = vsub.f32 %v956, %v988
    %v997 = vsub.f32 %v957, %v989
    %v998 = vsub.f32 %v958, %v990
    %v999 = vmul.f32 %v991, %v991
    %v1000 = vmul.f32 %v992, %v992
    %v1001 = vmul.f32 %v993, %v993
    %v1002 = vmul.f32 %v994, %v994
    %v1003 = vmul.f32 %v995, %v995
    %v1004 = vmul.f32 %v996, %v996
    %v1005 = vmul.f32 %v997, %v997
    %v1006 = vmul.f32 %v998, %v998
    %v1007 = vsel %vm266, %v999, 0.0
    %1008 = vadd.xlane.f32.xlu0 %v1007
    %v1009 = vpop.xlane.xlu0 %1008
    %v1010 = vsel %vm266, %v1000, 0.0
    %1011 = vadd.xlane.f32.xlu0 %v1010
    %v1012 = vpop.xlane.xlu0 %1011
    %v1013 = vsel %vm266, %v1001, 0.0
    %1014 = vadd.xlane.f32.xlu0 %v1013
    %v1015 = vpop.xlane.xlu0 %1014
    %v1016 = vsel %vm266, %v1002, 0.0
    %1017 = vadd.xlane.f32.xlu0 %v1016
    %v1018 = vpop.xlane.xlu0 %1017
    %v1019 = vsel %vm266, %v1003, 0.0
    %1020 = vadd.xlane.f32.xlu0 %v1019
    %v1021 = vpop.xlane.xlu0 %1020
    %v1022 = vsel %vm266, %v1004, 0.0
    %1023 = vadd.xlane.f32.xlu0 %v1022
    %v1024 = vpop.xlane.xlu0 %1023
    %v1025 = vsel %vm266, %v1005, 0.0
    %1026 = vadd.xlane.f32.xlu0 %v1025
    %v1027 = vpop.xlane.xlu0 %1026
    %v1028 = vsel %vm266, %v1006, 0.0
    %1029 = vadd.xlane.f32.xlu0 %v1028
    %v1030 = vpop.xlane.xlu0 %1029
    %v1031 = vmul.f32 %v1009, %v291
    %v1032 = vmul.f32 %v1012, %v291
    %v1033 = vmul.f32 %v1015, %v291
    %v1034 = vmul.f32 %v1018, %v291
    %v1035 = vmul.f32 %v1021, %v291
    %v1036 = vmul.f32 %v1024, %v291
    %v1037 = vmul.f32 %v1027, %v291
    %v1038 = vmul.f32 %v1030, %v291
    %v1039 = vadd.f32 %v1031, 1e-12
    %v1040 = vadd.f32 %v1032, 1e-12
    %v1041 = vadd.f32 %v1033, 1e-12
    %v1042 = vadd.f32 %v1034, 1e-12
    %v1043 = vadd.f32 %v1035, 1e-12
    %v1044 = vadd.f32 %v1036, 1e-12
    %v1045 = vadd.f32 %v1037, 1e-12
    %v1046 = vadd.f32 %v1038, 1e-12
    %v1047 = vrsqrt.pop %v1039
    %v1048 = vrsqrt.pop %v1040
    %v1049 = vrsqrt.pop %v1041
    %v1050 = vrsqrt.pop %v1042
    %v1051 = vrsqrt.pop %v1043
    %v1052 = vrsqrt.pop %v1044
    %v1053 = vrsqrt.pop %v1045
    %v1054 = vrsqrt.pop %v1046
    %v1055 = vmul.f32 %v991, %v1047
    %v1056 = vmul.f32 %v992, %v1048
    %v1057 = vmul.f32 %v993, %v1049
    %v1058 = vmul.f32 %v994, %v1050
    %v1059 = vmul.f32 %v995, %v1051
    %v1060 = vmul.f32 %v996, %v1052
    %v1061 = vmul.f32 %v997, %v1053
    %v1062 = vmul.f32 %v998, %v1054
    %v1063 = vlaneseq
    %v1064 = vshrl.u32 %v1063, 7
    %v1065 = vsub.s32 0, %v1064
    %v1066 = vrot.slane %v71, %v1065
    %v1067 = vmul.f32 %v1055, %v1066
    %v1068 = vmul.f32 %v1056, %v1066
    %v1069 = vmul.f32 %v1057, %v1066
    %v1070 = vmul.f32 %v1058, %v1066
    %v1071 = vmul.f32 %v1059, %v1066
    %v1072 = vmul.f32 %v1060, %v1066
    %v1073 = vmul.f32 %v1061, %v1066
    %v1074 = vmul.f32 %v1062, %v1066
    %v1075 = vlaneseq
    %v1076 = vshrl.u32 %v1075, 7
    %v1077 = vsub.s32 0, %v1076
    %v1078 = vrot.slane %v72, %v1077
    %v1079 = vadd.f32 %v1067, %v1078
    %v1080 = vadd.f32 %v1068, %v1078
    %v1081 = vadd.f32 %v1069, %v1078
    %v1082 = vadd.f32 %v1070, %v1078
    %v1083 = vadd.f32 %v1071, %v1078
    %v1084 = vadd.f32 %v1072, %v1078
    %v1085 = vadd.f32 %v1073, %v1078
    %v1086 = vadd.f32 %v1074, %v1078
    %v1087 = vpack.c.bf16 %v1080, %v1079
    %v1088 = vpack.c.bf16 %v1082, %v1081
    %v1089 = vpack.c.bf16 %v1084, %v1083
    %v1090 = vpack.c.bf16 %v1086, %v1085
    %v1095 = vunpack.c.l.b16 %v61
    %v1096 = vunpack.c.l.b16 %v62
    %v1097 = vunpack.c.l.b16 %v63
    %v1098 = vunpack.c.l.b16 %v64
    %v1099 = vpack.c.b16 %v1096, %v1095
    %v1100 = vpack.c.b16 %v1098, %v1097
    %v1104 = vsel %vm266, %v1087, 0
    %v1107 = vsel %vm266, %v1088, 0
    %v1110 = vsel %vm266, %v1089, 0
    %v1113 = vsel %vm266, %v1090, 0
    %1115 = vmatprep.subr.bf16.mxu0 0
    %1116 = vmatpush1.bf16.msra.mxu0 %v1099
    %1117 = vmatprep.subr.bf16.mxu0 0
    %1118 = vmatpush1.bf16.msra.mxu0 %v1100
    %1119 = vmatprep.subr.bf16.mxu0 0
    %1120 = vmatpush1.bf16.msra.mxu0 0
    %1121 = vmatprep.subr.bf16.mxu0 0
    %1122 = vmatpush1.bf16.msra.mxu0 0
    %1123 = vmatprep.subr.bf16.mxu0 0
    %1124 = vmatpush1.bf16.msra.mxu0 0
    %1125 = vmatprep.subr.bf16.mxu0 0
    %1126 = vmatpush1.bf16.msra.mxu0 0
    %1127 = vmatprep.subr.bf16.mxu0 0
    %1128 = vmatpush1.bf16.msra.mxu0 0
    %1129 = vmatprep.subr.bf16.mxu0 0
    %1130 = vmatpush1.bf16.msra.mxu0 0
    %1131 = vmatprep.subr.bf16.mxu0 0
    %1132 = vmatpush1.bf16.msra.mxu0 0
    %1133 = vmatprep.subr.bf16.mxu0 0
    %1134 = vmatpush1.bf16.msra.mxu0 0
    %1135 = vmatprep.subr.bf16.mxu0 0
    %1136 = vmatpush1.bf16.msra.mxu0 0
    %1137 = vmatprep.subr.bf16.mxu0 0
    %1138 = vmatpush1.bf16.msra.mxu0 0
    %1139 = vmatprep.subr.bf16.mxu0 0
    %1140 = vmatpush1.bf16.msra.mxu0 0
    %1141 = vmatprep.subr.bf16.mxu0 0
    %1142 = vmatpush1.bf16.msra.mxu0 0
    %1143 = vmatprep.subr.bf16.mxu0 0
    %1144 = vmatpush1.bf16.msra.mxu0 0
    %1145 = vmatprep.subr.bf16.mxu0 0
    %1146 = vmatpush1.bf16.msra.mxu0 0
    %1147 = vmatprep.mubr.bf16.mxu0 0
    %1148 = vmatmul.mubr.bf16.gmra.mrb[0].mxu0 %v1104
    %v1149 = vpop.f32.mrb[0].mxu0
    %v1150 = vadd.f32 0.0, %v1149
    %v1151 = vpop.f32.mrb[0].mxu0
    %v1152 = vpop.f32.mrb[0].mxu0
    %v1153 = vadd.f32 0.0, %v1152
    %v1154 = vpop.f32.mrb[0].mxu0
    %1155 = vmatprep.mubr.bf16.mxu0 0
    %1156 = vmatmul.mubr.bf16.gmra.mrb[0].mxu0 %v1107
    %v1157 = vpop.f32.mrb[0].mxu0
    %v1158 = vadd.f32 0.0, %v1157
    %v1159 = vpop.f32.mrb[0].mxu0
    %v1160 = vpop.f32.mrb[0].mxu0
    %v1161 = vadd.f32 0.0, %v1160
    %v1162 = vpop.f32.mrb[0].mxu0
    %1163 = vmatprep.mubr.bf16.mxu0 0
    %1164 = vmatmul.mubr.bf16.gmra.mrb[0].mxu0 %v1110
    %v1165 = vpop.f32.mrb[0].mxu0
    %v1166 = vadd.f32 0.0, %v1165
    %v1167 = vpop.f32.mrb[0].mxu0
    %v1168 = vpop.f32.mrb[0].mxu0
    %v1169 = vadd.f32 0.0, %v1168
    %v1170 = vpop.f32.mrb[0].mxu0
    %1171 = vmatprep.mubr.bf16.mxu0 0
    %1172 = vmatmul.mubr.bf16.gmra.mrb[0].mxu0 %v1113
    %v1173 = vpop.f32.mrb[0].mxu0
    %v1174 = vadd.f32 0.0, %v1173
    %v1175 = vpop.f32.mrb[0].mxu0
    %v1176 = vpop.f32.mrb[0].mxu0
    %v1177 = vadd.f32 0.0, %v1176
    %v1178 = vpop.f32.mrb[0].mxu0
    %1179 = vdwg.mxu0
    %v1180 = vlaneseq
    %v1181 = vshrl.u32 %v1180, 7
    %v1182 = vsub.s32 0, %v1181
    %v1183 = vrot.slane %v93, %v1182
    %v1184 = vadd.f32 %v1150, %v1183
    %v1185 = vadd.f32 %v1153, %v1183
    %v1186 = vadd.f32 %v1158, %v1183
    %v1187 = vadd.f32 %v1161, %v1183
    %v1188 = vadd.f32 %v1166, %v1183
    %v1189 = vadd.f32 %v1169, %v1183
    %v1190 = vadd.f32 %v1174, %v1183
    %v1191 = vadd.f32 %v1177, %v1183
    %v1192 = vmul.f32 %v1184, 0.5
    %v1193 = vmul.f32 %v1185, 0.5
    %v1194 = vmul.f32 %v1186, 0.5
    %v1195 = vmul.f32 %v1187, 0.5
    %v1196 = vmul.f32 %v1188, 0.5
    %v1197 = vmul.f32 %v1189, 0.5
    %v1198 = vmul.f32 %v1190, 0.5
    %v1199 = vmul.f32 %v1191, 0.5
    %v1200 = vmul.f32 %v1184, 0.044715
    %v1201 = vmul.f32 %v1185, 0.044715
    %v1202 = vmul.f32 %v1186, 0.044715
    %v1203 = vmul.f32 %v1187, 0.044715
    %v1204 = vmul.f32 %v1188, 0.044715
    %v1205 = vmul.f32 %v1189, 0.044715
    %v1206 = vmul.f32 %v1190, 0.044715
    %v1207 = vmul.f32 %v1191, 0.044715
    %v1208 = vmul.f32 %v1200, %v1184
    %v1209 = vmul.f32 %v1201, %v1185
    %v1210 = vmul.f32 %v1202, %v1186
    %v1211 = vmul.f32 %v1203, %v1187
    %v1212 = vmul.f32 %v1204, %v1188
    %v1213 = vmul.f32 %v1205, %v1189
    %v1214 = vmul.f32 %v1206, %v1190
    %v1215 = vmul.f32 %v1207, %v1191
    %v1216 = vmul.f32 %v1208, %v1184
    %v1217 = vmul.f32 %v1209, %v1185
    %v1218 = vmul.f32 %v1210, %v1186
    %v1219 = vmul.f32 %v1211, %v1187
    %v1220 = vmul.f32 %v1212, %v1188
    %v1221 = vmul.f32 %v1213, %v1189
    %v1222 = vmul.f32 %v1214, %v1190
    %v1223 = vmul.f32 %v1215, %v1191
    %v1224 = vadd.f32 %v1184, %v1216
    %v1225 = vadd.f32 %v1185, %v1217
    %v1226 = vadd.f32 %v1186, %v1218
    %v1227 = vadd.f32 %v1187, %v1219
    %v1228 = vadd.f32 %v1188, %v1220
    %v1229 = vadd.f32 %v1189, %v1221
    %v1230 = vadd.f32 %v1190, %v1222
    %v1231 = vadd.f32 %v1191, %v1223
    %v1232 = vmul.f32 %v1224, 0.7978846
    %v1233 = vmul.f32 %v1225, 0.7978846
    %v1234 = vmul.f32 %v1226, 0.7978846
    %v1235 = vmul.f32 %v1227, 0.7978846
    %v1236 = vmul.f32 %v1228, 0.7978846
    %v1237 = vmul.f32 %v1229, 0.7978846
    %v1238 = vmul.f32 %v1230, 0.7978846
    %v1239 = vmul.f32 %v1231, 0.7978846
    %v1240 = vtanh.pop %v1232
    %v1241 = vtanh.pop %v1233
    %v1242 = vtanh.pop %v1234
    %v1243 = vtanh.pop %v1235
    %v1244 = vtanh.pop %v1236
    %v1245 = vtanh.pop %v1237
    %v1246 = vtanh.pop %v1238
    %v1247 = vtanh.pop %v1239
    %v1248 = vadd.f32 %v1240, 1.0
    %v1249 = vadd.f32 %v1241, 1.0
    %v1250 = vadd.f32 %v1242, 1.0
    %v1251 = vadd.f32 %v1243, 1.0
    %v1252 = vadd.f32 %v1244, 1.0
    %v1253 = vadd.f32 %v1245, 1.0
    %v1254 = vadd.f32 %v1246, 1.0
    %v1255 = vadd.f32 %v1247, 1.0
    %v1256 = vmul.f32 %v1192, %v1248
    %v1257 = vmul.f32 %v1193, %v1249
    %v1258 = vmul.f32 %v1194, %v1250
    %v1259 = vmul.f32 %v1195, %v1251
    %v1260 = vmul.f32 %v1196, %v1252
    %v1261 = vmul.f32 %v1197, %v1253
    %v1262 = vmul.f32 %v1198, %v1254
    %v1263 = vmul.f32 %v1199, %v1255
    %v1264 = vpack.c.bf16 %v1257, %v1256
    %v1265 = vpack.c.bf16 %v1259, %v1258
    %v1266 = vpack.c.bf16 %v1261, %v1260
    %v1267 = vpack.c.bf16 %v1263, %v1262
    %v1268 = vlaneseq
    %v1269 = vshrl.u32 %v1268, 7
    %v1270 = vsub.s32 0, %v1269
    %v1271 = vrot.slane %v73, %v1270
    %v1280 = vunpack.c.l.b16 %v45
    %v1281 = vunpack.c.l.b16 %v46
    %v1282 = vunpack.c.l.b16 %v47
    %v1283 = vunpack.c.l.b16 %v48
    %v1284 = vunpack.c.l.b16 %v49
    %v1285 = vunpack.c.l.b16 %v50
    %v1286 = vunpack.c.l.b16 %v51
    %v1287 = vunpack.c.l.b16 %v52
    %v1288 = vpack.c.b16 %v1281, %v1280
    %v1289 = vpack.c.b16 %v1283, %v1282
    %v1290 = vpack.c.b16 %v1285, %v1284
    %v1291 = vpack.c.b16 %v1287, %v1286
    %v1297 = vsel %vm188, %v1264, 0
    %v1300 = vsel %vm188, %v1265, 0
    %v1303 = vsel %vm188, %v1266, 0
    %v1306 = vsel %vm188, %v1267, 0
    %1308 = vmatprep.subr.bf16.mxu0 0
    %1309 = vmatpush1.bf16.msra.mxu0 %v1288
    %1310 = vmatprep.subr.bf16.mxu0 0
    %1311 = vmatpush1.bf16.msra.mxu0 %v1289
    %1312 = vmatprep.subr.bf16.mxu0 0
    %1313 = vmatpush1.bf16.msra.mxu0 %v1290
    %1314 = vmatprep.subr.bf16.mxu0 0
    %1315 = vmatpush1.bf16.msra.mxu0 %v1291
    %1316 = vmatprep.subr.bf16.mxu0 0
    %1317 = vmatpush1.bf16.msra.mxu0 0
    %1318 = vmatprep.subr.bf16.mxu0 0
    %1319 = vmatpush1.bf16.msra.mxu0 0
    %1320 = vmatprep.subr.bf16.mxu0 0
    %1321 = vmatpush1.bf16.msra.mxu0 0
    %1322 = vmatprep.subr.bf16.mxu0 0
    %1323 = vmatpush1.bf16.msra.mxu0 0
    %1324 = vmatprep.subr.bf16.mxu0 0
    %1325 = vmatpush1.bf16.msra.mxu0 0
    %1326 = vmatprep.subr.bf16.mxu0 0
    %1327 = vmatpush1.bf16.msra.mxu0 0
    %1328 = vmatprep.subr.bf16.mxu0 0
    %1329 = vmatpush1.bf16.msra.mxu0 0
    %1330 = vmatprep.subr.bf16.mxu0 0
    %1331 = vmatpush1.bf16.msra.mxu0 0
    %1332 = vmatprep.subr.bf16.mxu0 0
    %1333 = vmatpush1.bf16.msra.mxu0 0
    %1334 = vmatprep.subr.bf16.mxu0 0
    %1335 = vmatpush1.bf16.msra.mxu0 0
    %1336 = vmatprep.subr.bf16.mxu0 0
    %1337 = vmatpush1.bf16.msra.mxu0 0
    %1338 = vmatprep.subr.bf16.mxu0 0
    %1339 = vmatpush1.bf16.msra.mxu0 0
    %1340 = vmatprep.mubr.bf16.mxu0 0
    %1341 = vmatmul.mubr.bf16.gmra.mrb[0].mxu0 %v1297
    %v1342 = vpop.f32.mrb[0].mxu0
    %v1343 = vadd.f32 %v1271, %v1342
    %v1344 = vpop.f32.mrb[0].mxu0
    %v1345 = vpop.f32.mrb[0].mxu0
    %v1346 = vadd.f32 %v1271, %v1345
    %v1347 = vpop.f32.mrb[0].mxu0
    %1348 = vmatprep.mubr.bf16.mxu0 0
    %1349 = vmatmul.mubr.bf16.gmra.mrb[0].mxu0 %v1300
    %v1350 = vpop.f32.mrb[0].mxu0
    %v1351 = vadd.f32 %v1271, %v1350
    %v1352 = vpop.f32.mrb[0].mxu0
    %v1353 = vpop.f32.mrb[0].mxu0
    %v1354 = vadd.f32 %v1271, %v1353
    %v1355 = vpop.f32.mrb[0].mxu0
    %1356 = vmatprep.mubr.bf16.mxu0 0
    %1357 = vmatmul.mubr.bf16.gmra.mrb[0].mxu0 %v1303
    %v1358 = vpop.f32.mrb[0].mxu0
    %v1359 = vadd.f32 %v1271, %v1358
    %v1360 = vpop.f32.mrb[0].mxu0
    %v1361 = vpop.f32.mrb[0].mxu0
    %v1362 = vadd.f32 %v1271, %v1361
    %v1363 = vpop.f32.mrb[0].mxu0
    %1364 = vmatprep.mubr.bf16.mxu0 0
    %1365 = vmatmul.mubr.bf16.gmra.mrb[0].mxu0 %v1306
    %v1366 = vpop.f32.mrb[0].mxu0
    %v1367 = vadd.f32 %v1271, %v1366
    %v1368 = vpop.f32.mrb[0].mxu0
    %v1369 = vpop.f32.mrb[0].mxu0
    %v1370 = vadd.f32 %v1271, %v1369
    %v1371 = vpop.f32.mrb[0].mxu0
    %1372 = vdwg.mxu0
    %v1373 = vadd.f32 %v1079, %v1343
    %v1374 = vadd.f32 %v1080, %v1346
    %v1375 = vadd.f32 %v1081, %v1351
    %v1376 = vadd.f32 %v1082, %v1354
    %v1377 = vadd.f32 %v1083, %v1359
    %v1378 = vadd.f32 %v1084, %v1362
    %v1379 = vadd.f32 %v1085, %v1367
    %v1380 = vadd.f32 %v1086, %v1370
    %v1381 = vsel %vm266, %v1373, 0.0
    %1382 = vadd.xlane.f32.xlu0 %v1381
    %v1383 = vpop.xlane.xlu0 %1382
    %v1384 = vsel %vm266, %v1374, 0.0
    %1385 = vadd.xlane.f32.xlu0 %v1384
    %v1386 = vpop.xlane.xlu0 %1385
    %v1387 = vsel %vm266, %v1375, 0.0
    %1388 = vadd.xlane.f32.xlu0 %v1387
    %v1389 = vpop.xlane.xlu0 %1388
    %v1390 = vsel %vm266, %v1376, 0.0
    %1391 = vadd.xlane.f32.xlu0 %v1390
    %v1392 = vpop.xlane.xlu0 %1391
    %v1393 = vsel %vm266, %v1377, 0.0
    %1394 = vadd.xlane.f32.xlu0 %v1393
    %v1395 = vpop.xlane.xlu0 %1394
    %v1396 = vsel %vm266, %v1378, 0.0
    %1397 = vadd.xlane.f32.xlu0 %v1396
    %v1398 = vpop.xlane.xlu0 %1397
    %v1399 = vsel %vm266, %v1379, 0.0
    %1400 = vadd.xlane.f32.xlu0 %v1399
    %v1401 = vpop.xlane.xlu0 %1400
    %v1402 = vsel %vm266, %v1380, 0.0
    %1403 = vadd.xlane.f32.xlu0 %v1402
    %v1404 = vpop.xlane.xlu0 %1403
    %v1405 = vmul.f32 %v1383, %v291
    %v1406 = vmul.f32 %v1386, %v291
    %v1407 = vmul.f32 %v1389, %v291
    %v1408 = vmul.f32 %v1392, %v291
    %v1409 = vmul.f32 %v1395, %v291
    %v1410 = vmul.f32 %v1398, %v291
    %v1411 = vmul.f32 %v1401, %v291
    %v1412 = vmul.f32 %v1404, %v291
    %v1413 = vsub.f32 %v1373, %v1405
    %v1414 = vsub.f32 %v1374, %v1406
    %v1415 = vsub.f32 %v1375, %v1407
    %v1416 = vsub.f32 %v1376, %v1408
    %v1417 = vsub.f32 %v1377, %v1409
    %v1418 = vsub.f32 %v1378, %v1410
    %v1419 = vsub.f32 %v1379, %v1411
    %v1420 = vsub.f32 %v1380, %v1412
    %v1421 = vmul.f32 %v1413, %v1413
    %v1422 = vmul.f32 %v1414, %v1414
    %v1423 = vmul.f32 %v1415, %v1415
    %v1424 = vmul.f32 %v1416, %v1416
    %v1425 = vmul.f32 %v1417, %v1417
    %v1426 = vmul.f32 %v1418, %v1418
    %v1427 = vmul.f32 %v1419, %v1419
    %v1428 = vmul.f32 %v1420, %v1420
    %v1429 = vsel %vm266, %v1421, 0.0
    %1430 = vadd.xlane.f32.xlu0 %v1429
    %v1431 = vpop.xlane.xlu0 %1430
    %v1432 = vsel %vm266, %v1422, 0.0
    %1433 = vadd.xlane.f32.xlu0 %v1432
    %v1434 = vpop.xlane.xlu0 %1433
    %v1435 = vsel %vm266, %v1423, 0.0
    %1436 = vadd.xlane.f32.xlu0 %v1435
    %v1437 = vpop.xlane.xlu0 %1436
    %v1438 = vsel %vm266, %v1424, 0.0
    %1439 = vadd.xlane.f32.xlu0 %v1438
    %v1440 = vpop.xlane.xlu0 %1439
    %v1441 = vsel %vm266, %v1425, 0.0
    %1442 = vadd.xlane.f32.xlu0 %v1441
    %v1443 = vpop.xlane.xlu0 %1442
    %v1444 = vsel %vm266, %v1426, 0.0
    %1445 = vadd.xlane.f32.xlu0 %v1444
    %v1446 = vpop.xlane.xlu0 %1445
    %v1447 = vsel %vm266, %v1427, 0.0
    %1448 = vadd.xlane.f32.xlu0 %v1447
    %v1449 = vpop.xlane.xlu0 %1448
    %v1450 = vsel %vm266, %v1428, 0.0
    %1451 = vadd.xlane.f32.xlu0 %v1450
    %v1452 = vpop.xlane.xlu0 %1451
    %v1453 = vmul.f32 %v1431, %v291
    %v1454 = vmul.f32 %v1434, %v291
    %v1455 = vmul.f32 %v1437, %v291
    %v1456 = vmul.f32 %v1440, %v291
    %v1457 = vmul.f32 %v1443, %v291
    %v1458 = vmul.f32 %v1446, %v291
    %v1459 = vmul.f32 %v1449, %v291
    %v1460 = vmul.f32 %v1452, %v291
    %v1461 = vadd.f32 %v1453, 1e-12
    %v1462 = vadd.f32 %v1454, 1e-12
    %v1463 = vadd.f32 %v1455, 1e-12
    %v1464 = vadd.f32 %v1456, 1e-12
    %v1465 = vadd.f32 %v1457, 1e-12
    %v1466 = vadd.f32 %v1458, 1e-12
    %v1467 = vadd.f32 %v1459, 1e-12
    %v1468 = vadd.f32 %v1460, 1e-12
    %v1469 = vrsqrt.pop %v1461
    %v1470 = vrsqrt.pop %v1462
    %v1471 = vrsqrt.pop %v1463
    %v1472 = vrsqrt.pop %v1464
    %v1473 = vrsqrt.pop %v1465
    %v1474 = vrsqrt.pop %v1466
    %v1475 = vrsqrt.pop %v1467
    %v1476 = vrsqrt.pop %v1468
    %v1477 = vmul.f32 %v1413, %v1469
    %v1478 = vmul.f32 %v1414, %v1470
    %v1479 = vmul.f32 %v1415, %v1471
    %v1480 = vmul.f32 %v1416, %v1472
    %v1481 = vmul.f32 %v1417, %v1473
    %v1482 = vmul.f32 %v1418, %v1474
    %v1483 = vmul.f32 %v1419, %v1475
    %v1484 = vmul.f32 %v1420, %v1476
    %v1485 = vlaneseq
    %v1486 = vshrl.u32 %v1485, 7
    %v1487 = vsub.s32 0, %v1486
    %v1488 = vrot.slane %v74, %v1487
    %v1489 = vmul.f32 %v1477, %v1488
    %v1490 = vmul.f32 %v1478, %v1488
    %v1491 = vmul.f32 %v1479, %v1488
    %v1492 = vmul.f32 %v1480, %v1488
    %v1493 = vmul.f32 %v1481, %v1488
    %v1494 = vmul.f32 %v1482, %v1488
    %v1495 = vmul.f32 %v1483, %v1488
    %v1496 = vmul.f32 %v1484, %v1488
    %v1497 = vlaneseq
    %v1498 = vshrl.u32 %v1497, 7
    %v1499 = vsub.s32 0, %v1498
    %v1500 = vrot.slane %v75, %v1499
    %v1501 = vadd.f32 %v1489, %v1500
    %v1502 = vadd.f32 %v1490, %v1500
    %v1503 = vadd.f32 %v1491, %v1500
    %v1504 = vadd.f32 %v1492, %v1500
    %v1505 = vadd.f32 %v1493, %v1500
    %v1506 = vadd.f32 %v1494, %v1500
    %v1507 = vadd.f32 %v1495, %v1500
    %v1508 = vadd.f32 %v1496, %v1500
    %v1509 = vpack.c.bf16 %v92, %v92
    %v1510 = vpack.c.bf16 %v1502, %v1501
    %v1511 = vpack.c.bf16 %v1504, %v1503
    %v1512 = vpack.c.bf16 %v1506, %v1505
    %v1513 = vpack.c.bf16 %v1508, %v1507
    %v1515 = vsel %vm188, %v1509, 0
    %1517 = vmatprep.subr.bf16.mxu0 0
    %1518 = vmatpush1.bf16.msra.mxu0 %v1510
    %1519 = vmatprep.subr.bf16.mxu0 0
    %1520 = vmatpush1.bf16.msra.mxu0 %v1511
    %1521 = vmatprep.subr.bf16.mxu0 0
    %1522 = vmatpush1.bf16.msra.mxu0 %v1512
    %1523 = vmatprep.subr.bf16.mxu0 0
    %1524 = vmatpush1.bf16.msra.mxu0 %v1513
    %1525 = vmatprep.subr.bf16.mxu0 0
    %1526 = vmatpush1.bf16.msra.mxu0 0
    %1527 = vmatprep.subr.bf16.mxu0 0
    %1528 = vmatpush1.bf16.msra.mxu0 0
    %1529 = vmatprep.subr.bf16.mxu0 0
    %1530 = vmatpush1.bf16.msra.mxu0 0
    %1531 = vmatprep.subr.bf16.mxu0 0
    %1532 = vmatpush1.bf16.msra.mxu0 0
    %1533 = vmatprep.subr.bf16.mxu0 0
    %1534 = vmatpush1.bf16.msra.mxu0 0
    %1535 = vmatprep.subr.bf16.mxu0 0
    %1536 = vmatpush1.bf16.msra.mxu0 0
    %1537 = vmatprep.subr.bf16.mxu0 0
    %1538 = vmatpush1.bf16.msra.mxu0 0
    %1539 = vmatprep.subr.bf16.mxu0 0
    %1540 = vmatpush1.bf16.msra.mxu0 0
    %1541 = vmatprep.subr.bf16.mxu0 0
    %1542 = vmatpush1.bf16.msra.mxu0 0
    %1543 = vmatprep.subr.bf16.mxu0 0
    %1544 = vmatpush1.bf16.msra.mxu0 0
    %1545 = vmatprep.subr.bf16.mxu0 0
    %1546 = vmatpush1.bf16.msra.mxu0 0
    %1547 = vmatprep.subr.bf16.mxu0 0
    %1548 = vmatpush1.bf16.msra.mxu0 0
    %1549 = vmatprep.mubr.bf16.mxu0 0
    %1550 = vmatmul.mubr.bf16.gmra.mrb[0].mxu0 %v1515
    %v1551 = vpop.f32.mrb[0].mxu0
    %v1552 = vadd.f32 0.0, %v1551
    %v1553 = vpop.f32.mrb[0].mxu0
    %v1554 = vpop.f32.mrb[0].mxu0
    %v1555 = vpop.f32.mrb[0].mxu0
    %1556 = vdwg.mxu0
    %v1557 = vpack.c.bf16 %v1552, %v1552
    %v1558 = vlaneseq
    %v1559 = vshrl.u32 %v1558, 7
    %v1560 = vsub.s32 0, %v1559
    %v1561 = vrot.slane %v76, %v1560
    %v1566 = vunpack.c.l.b16 %v53
    %v1567 = vunpack.c.l.b16 %v54
    %v1568 = vunpack.c.l.b16 %v55
    %v1569 = vunpack.c.l.b16 %v56
    %v1570 = vpack.c.b16 %v1567, %v1566
    %v1571 = vpack.c.b16 %v1569, %v1568
    %v1575 = vsel %vm266, %v1557, 0
    %1577 = vmatprep.subr.bf16.mxu0 0
    %1578 = vmatpush1.bf16.msra.mxu0 %v1570
    %1579 = vmatprep.subr.bf16.mxu0 0
    %1580 = vmatpush1.bf16.msra.mxu0 %v1571
    %1581 = vmatprep.subr.bf16.mxu0 0
    %1582 = vmatpush1.bf16.msra.mxu0 0
    %1583 = vmatprep.subr.bf16.mxu0 0
    %1584 = vmatpush1.bf16.msra.mxu0 0
    %1585 = vmatprep.subr.bf16.mxu0 0
    %1586 = vmatpush1.bf16.msra.mxu0 0
    %1587 = vmatprep.subr.bf16.mxu0 0
    %1588 = vmatpush1.bf16.msra.mxu0 0
    %1589 = vmatprep.subr.bf16.mxu0 0
    %1590 = vmatpush1.bf16.msra.mxu0 0
    %1591 = vmatprep.subr.bf16.mxu0 0
    %1592 = vmatpush1.bf16.msra.mxu0 0
    %1593 = vmatprep.subr.bf16.mxu0 0
    %1594 = vmatpush1.bf16.msra.mxu0 0
    %1595 = vmatprep.subr.bf16.mxu0 0
    %1596 = vmatpush1.bf16.msra.mxu0 0
    %1597 = vmatprep.subr.bf16.mxu0 0
    %1598 = vmatpush1.bf16.msra.mxu0 0
    %1599 = vmatprep.subr.bf16.mxu0 0
    %1600 = vmatpush1.bf16.msra.mxu0 0
    %1601 = vmatprep.subr.bf16.mxu0 0
    %1602 = vmatpush1.bf16.msra.mxu0 0
    %1603 = vmatprep.subr.bf16.mxu0 0
    %1604 = vmatpush1.bf16.msra.mxu0 0
    %1605 = vmatprep.subr.bf16.mxu0 0
    %1606 = vmatpush1.bf16.msra.mxu0 0
    %1607 = vmatprep.subr.bf16.mxu0 0
    %1608 = vmatpush1.bf16.msra.mxu0 0
    %1609 = vmatprep.mubr.bf16.mxu0 0
    %1610 = vmatmul.mubr.bf16.gmra.mrb[0].mxu0 %v1575
    %v1611 = vpop.f32.mrb[0].mxu0
    %v1612 = vadd.f32 %v1561, %v1611
    %v1613 = vpop.f32.mrb[0].mxu0
    %v1614 = vpop.f32.mrb[0].mxu0
    %v1615 = vpop.f32.mrb[0].mxu0
    %1616 = vdwg.mxu0
    %v1617 = vtanh.pop %v1612
    %v1618 = vlaneseq
    %v1619 = vshrl.u32 %v1618, 7
    %v1620 = vsub.s32 0, %v1619
    %v1621 = vrot.slane %v77, %v1620
    %vm1622 = vcmask 64512
    %v1624 = vsel %vm1622, %v79, 0
    %1626 = vmatprep.subr.mxu0 0.0
    %1627 = vmatpush1.msra.mxu0 %v1617
    %1628 = vmatprep.subr.mxu0 0.0
    %1629 = vmatpush1.msra.mxu0 0.0
    %1630 = vmatprep.subr.mxu0 0.0
    %1631 = vmatpush1.msra.mxu0 0.0
    %1632 = vmatprep.subr.mxu0 0.0
    %1633 = vmatpush1.msra.mxu0 0.0
    %1634 = vmatprep.subr.mxu0 0.0
    %1635 = vmatpush1.msra.mxu0 0.0
    %1636 = vmatprep.subr.mxu0 0.0
    %1637 = vmatpush1.msra.mxu0 0.0
    %1638 = vmatprep.subr.mxu0 0.0
    %1639 = vmatpush1.msra.mxu0 0.0
    %1640 = vmatprep.subr.mxu0 0.0
    %1641 = vmatpush1.msra.mxu0 0.0
    %1642 = vmatprep.subr.mxu0 0.0
    %1643 = vmatpush1.msra.mxu0 0.0
    %1644 = vmatprep.subr.mxu0 0.0
    %1645 = vmatpush1.msra.mxu0 0.0
    %1646 = vmatprep.subr.mxu0 0.0
    %1647 = vmatpush1.msra.mxu0 0.0
    %1648 = vmatprep.subr.mxu0 0.0
    %1649 = vmatpush1.msra.mxu0 0.0
    %1650 = vmatprep.subr.mxu0 0.0
    %1651 = vmatpush1.msra.mxu0 0.0
    %1652 = vmatprep.subr.mxu0 0.0
    %1653 = vmatpush1.msra.mxu0 0.0
    %1654 = vmatprep.subr.mxu0 0.0
    %1655 = vmatpush1.msra.mxu0 0.0
    %1656 = vmatprep.subr.mxu0 0.0
    %1657 = vmatpush1.msra.mxu0 0.0
    %1658 = vmatprep.subr.mxu0 0.0
    %1659 = vmatpush1.msra.mxu0 0.0
    %1660 = vmatprep.subr.mxu0 0.0
    %1661 = vmatpush1.msra.mxu0 0.0
    %1662 = vmatprep.subr.mxu0 0.0
    %1663 = vmatpush1.msra.mxu0 0.0
    %1664 = vmatprep.subr.mxu0 0.0
    %1665 = vmatpush1.msra.mxu0 0.0
    %1666 = vmatprep.subr.mxu0 0.0
    %1667 = vmatpush1.msra.mxu0 0.0
    %1668 = vmatprep.subr.mxu0 0.0
    %1669 = vmatpush1.msra.mxu0 0.0
    %1670 = vmatprep.subr.mxu0 0.0
    %1671 = vmatpush1.msra.mxu0 0.0
    %1672 = vmatprep.subr.mxu0 0.0
    %1673 = vmatpush1.msra.mxu0 0.0
    %1674 = vmatprep.subr.mxu0 0.0
    %1675 = vmatpush1.msra.mxu0 0.0
    %1676 = vmatprep.subr.mxu0 0.0
    %1677 = vmatpush1.msra.mxu0 0.0
    %1678 = vmatprep.subr.mxu0 0.0
    %1679 = vmatpush1.msra.mxu0 0.0
    %1680 = vmatprep.subr.mxu0 0.0
    %1681 = vmatpush1.msra.mxu0 0.0
    %1682 = vmatprep.subr.mxu0 0.0
    %1683 = vmatpush1.msra.mxu0 0.0
    %1684 = vmatprep.subr.mxu0 0.0
    %1685 = vmatpush1.msra.mxu0 0.0
    %1686 = vmatprep.subr.mxu0 0.0
    %1687 = vmatpush1.msra.mxu0 0.0
    %1688 = vmatprep.subr.mxu0 0.0
    %1689 = vmatpush1.msra.mxu0 0.0
    %1690 = vmatprep.mubr.f32.mxu0 0.0
    %1691 = vmatmul.mubr.f32.gmra.mrb[0].mxu0 %v1624
    %v1692 = vpop.f32.mrb[0].mxu0
    %v1693 = vadd.f32 %v1621, %v1692
    %v1694 = vpop.f32.mrb[0].mxu0
    %1695 = vdwg.mxu0
    %v1696 = vlaneseq
    %v1697 = vshrl.u32 %v1696, 7
    %v1698 = vsub.s32 0, %v1697
    %v1699 = vrot.slane %v78, %v1698
    %v1701 = vsel %vm266, %v1693, 0
    %1703 = vmatprep.subr.mxu0 0.0
    %1704 = vmatpush1.msra.mxu0 %v80
    %1705 = vmatprep.subr.mxu0 0.0
    %1706 = vmatpush1.msra.mxu0 %v81
    %1707 = vmatprep.subr.mxu0 0.0
    %1708 = vmatpush1.msra.mxu0 %v82
    %1709 = vmatprep.subr.mxu0 0.0
    %1710 = vmatpush1.msra.mxu0 %v83
    %1711 = vmatprep.subr.mxu0 0.0
    %1712 = vmatpush1.msra.mxu0 0.0
    %1713 = vmatprep.subr.mxu0 0.0
    %1714 = vmatpush1.msra.mxu0 0.0
    %1715 = vmatprep.subr.mxu0 0.0
    %1716 = vmatpush1.msra.mxu0 0.0
    %1717 = vmatprep.subr.mxu0 0.0
    %1718 = vmatpush1.msra.mxu0 0.0
    %1719 = vmatprep.subr.mxu0 0.0
    %1720 = vmatpush1.msra.mxu0 0.0
    %1721 = vmatprep.subr.mxu0 0.0
    %1722 = vmatpush1.msra.mxu0 0.0
    %1723 = vmatprep.subr.mxu0 0.0
    %1724 = vmatpush1.msra.mxu0 0.0
    %1725 = vmatprep.subr.mxu0 0.0
    %1726 = vmatpush1.msra.mxu0 0.0
    %1727 = vmatprep.subr.mxu0 0.0
    %1728 = vmatpush1.msra.mxu0 0.0
    %1729 = vmatprep.subr.mxu0 0.0
    %1730 = vmatpush1.msra.mxu0 0.0
    %1731 = vmatprep.subr.mxu0 0.0
    %1732 = vmatpush1.msra.mxu0 0.0
    %1733 = vmatprep.subr.mxu0 0.0
    %1734 = vmatpush1.msra.mxu0 0.0
    %1735 = vmatprep.subr.mxu0 0.0
    %1736 = vmatpush1.msra.mxu0 0.0
    %1737 = vmatprep.subr.mxu0 0.0
    %1738 = vmatpush1.msra.mxu0 0.0
    %1739 = vmatprep.subr.mxu0 0.0
    %1740 = vmatpush1.msra.mxu0 0.0
    %1741 = vmatprep.subr.mxu0 0.0
    %1742 = vmatpush1.msra.mxu0 0.0
    %1743 = vmatprep.subr.mxu0 0.0
    %1744 = vmatpush1.msra.mxu0 0.0
    %1745 = vmatprep.subr.mxu0 0.0
    %1746 = vmatpush1.msra.mxu0 0.0
    %1747 = vmatprep.subr.mxu0 0.0
    %1748 = vmatpush1.msra.mxu0 0.0
    %1749 = vmatprep.subr.mxu0 0.0
    %1750 = vmatpush1.msra.mxu0 0.0
    %1751 = vmatprep.subr.mxu0 0.0
    %1752 = vmatpush1.msra.mxu0 0.0
    %1753 = vmatprep.subr.mxu0 0.0
    %1754 = vmatpush1.msra.mxu0 0.0
    %1755 = vmatprep.subr.mxu0 0.0
    %1756 = vmatpush1.msra.mxu0 0.0
    %1757 = vmatprep.subr.mxu0 0.0
    %1758 = vmatpush1.msra.mxu0 0.0
    %1759 = vmatprep.subr.mxu0 0.0
    %1760 = vmatpush1.msra.mxu0 0.0
    %1761 = vmatprep.subr.mxu0 0.0
    %1762 = vmatpush1.msra.mxu0 0.0
    %1763 = vmatprep.subr.mxu0 0.0
    %1764 = vmatpush1.msra.mxu0 0.0
    %1765 = vmatprep.subr.mxu0 0.0
    %1766 = vmatpush1.msra.mxu0 0.0
    %1767 = vmatprep.mubr.f32.mxu0 0.0
    %1768 = vmatmul.mubr.f32.gmra.mrb[0].mxu0 %v1701
    %v1769 = vpop.f32.mrb[0].mxu0
    %v1770 = vadd.f32 %v1699, %v1769
    %v1771 = vpop.f32.mrb[0].mxu0
    %1772 = vdwg.mxu0
    %vm1773 = vcmask 17408
    %1774 = vst.msk [vmem:[#allocation2] sm:$0x3] %vm1773, %v1770
    // Predicated region
    $region26: #{model_forward.1} parent=1 // pred_check
      _
    $region27: #{model_forward.1} parent=1 // pred_check_branch
      %1776 = sbr.rel (0) target = $region29
    $region28: #{model_forward.1} parent=1 // pred_region
      %s1778 = ssub.s32 32, 32
      %1779 = vsyncadd [#allocation3], %s1778
      %s1781 = sshll.u32 [#allocation2], 4
      %s1782 = int_to_ptr.vmem [resolvable:$true] %s1781
      %1784 = dma.vmem_to_hbm [thread:$0]  %s1782, 32, %s6, [#allocation3]
    $region29: #{model_forward.1} parent=1 // pred_fallthru
      _
    // Predicated region
    $region30: #{model_forward.1} parent=1 // pred_check
      _
    $region31: #{model_forward.1} parent=1 // pred_check_branch
      %1786 = sbr.rel (0) target = $region33
    $region32: #{model_forward.1} parent=1 // pred_region
      %1787 = dma.done [#allocation3], 32
    $region33: #{model_forward.1} parent=1 // pred_fallthru
      _
    %1788 = vsyncpa [#allocation3], 1

</llo_original>
